<compile_context>
chip_gen: v7x
topology: tpu7x:2x2x1
jax: 0.10.0
libtpu: 0.0.40
codegen_flags: <defaults>
</compile_context>

<pallas_src>
import functools

import jax
import jax.numpy as jnp
from jax import lax
from jax.experimental import pallas as pl
from jax.experimental.pallas import tpu as pltpu


# ---------------------------------------------------------------------------
# Plain-JAX helpers (parameter setup / layout plumbing)
# ---------------------------------------------------------------------------
def cxcy_to_xy(cxcy):
    return jnp.concatenate(
        [cxcy[:, :2] - cxcy[:, 2:] / 2.0, cxcy[:, :2] + cxcy[:, 2:] / 2.0], axis=1
    )


def make_priors(grid=16, wh=0.2):
    cs = (jnp.arange(grid, dtype=jnp.float32) + 0.5) / grid
    cx, cy = jnp.meshgrid(cs, cs, indexing="xy")
    cx = cx.reshape(-1)
    cy = cy.reshape(-1)
    w = jnp.full_like(cx, wh)
    h = jnp.full_like(cx, wh)
    return jnp.stack([cx, cy, w, h], axis=1)  # (grid*grid, 4) cxcywh


def _vmem_capacity_bytes():
    try:
        return int(pltpu.get_tpu_info().vmem_capacity_bytes)
    except Exception:
        return 64 << 20  # conservative (v7x per-TC VMEM)


def _is_v7x():
    try:
        kind = jax.devices()[0].device_kind.lower()
        return ("v7" in kind) or ("7x" in kind)
    except Exception:
        return False


def _pick_tiling(n, p_pad, c, n_obj, vmem_cap, prefer_split):
    """Images per grid step + VMEM limit.

    Budget counts the double-buffered I/O blocks *and* an estimate of the
    kernel's live f32 intermediates (matching temps were previously uncounted
    and could spill on v7x).  Larger TB amortizes per-step overhead on
    v5e/v6e; prefer_split keeps grid >= 2 so v7x shards the batch across both
    TensorCores.
    """
    per_img_io = ((4 + c) * p_pad + n_obj * 5 + 128) * 4           # one buffer copy
    per_img_tmp = (4 * n_obj + 16 + c) * p_pad * 4                 # live intermediates
    shared = 2 * 10 * p_pad * 4
    budget = int(vmem_cap * 0.55)

    def need(tb):
        return shared + tb * (2 * per_img_io + per_img_tmp)

    divisors = [d for d in (32, 16, 8, 4, 2, 1) if n % d == 0]
    fitting = [d for d in divisors if need(d) <= budget] or [divisors[-1]]
    tb = fitting[0]
    if prefer_split and n // tb < 2:
        for d in fitting:
            if n // d >= 2:
                tb = d
                break
    vmem_limit = int(min(max(need(tb) + (8 << 20), 32 << 20), int(vmem_cap * 0.8)))
    return tb, vmem_limit


# ---------------------------------------------------------------------------
# Pallas kernel: matching + encoding + CE + hard-neg mining + reductions
# ---------------------------------------------------------------------------
def _multibox_kernel(
    gt_ref,        # (TB, n_obj, 5) f32: [x1,y1,x2,y2,label]; label<=0 => padding row
    priors_ref,    # (10, P) f32: [px1,py1,px2,py2, pcx,pcy, 10/pw,10/ph, log pw, log ph]
    plocs_ref,     # (TB, 4, P) f32 predicted offsets, coordinate-major
    pscores_ref,   # (TB, C, P) f32 class logits, class-major
    stats_ref,     # (1, TB, 128) f32: lane0=n_pos, 1=ce_pos, 2=l1_pos, 3=ce_hard_neg
    *,
    n_valid,
    threshold,
    neg_pos_ratio,
    n_bisect=30,
):
    f32 = jnp.float32
    TB, C, P = pscores_ref.shape
    n_obj = gt_ref.shape[1]

    gt = gt_ref[...]
    pr = priors_ref[...]

    bx1 = gt[:, :, 0:1]
    by1 = gt[:, :, 1:2]
    bx2 = gt[:, :, 2:3]
    by2 = gt[:, :, 3:4]
    labf = gt[:, :, 4:5]                       # (TB, n_obj, 1)
    valid = labf > 0.5                         # padded / dummy objects are ignored

    px1 = pr[0:1, :]
    py1 = pr[1:2, :]
    px2 = pr[2:3, :]
    py2 = pr[3:4, :]                           # (1, P)

    # ---- IoU between gt boxes (sublanes) and priors (lanes): (TB, n_obj, P) ----
    iw = jnp.maximum(jnp.minimum(bx2, px2) - jnp.maximum(bx1, px1), 0.0)
    ih = jnp.maximum(jnp.minimum(by2, py2) - jnp.maximum(by1, py1), 0.0)
    inter = iw * ih
    area_b = (bx2 - bx1) * (by2 - by1)         # (TB, n_obj, 1)
    area_p = (px2 - px1) * (py2 - py1)         # (1, P)
    overlap = inter / (area_b + area_p - inter)
    overlap = jnp.where(valid, overlap, -1.0)  # invalid objects never match

    obj_iota = lax.broadcasted_iota(jnp.int32, (TB, n_obj, P), 1)
    lane_iota = lax.broadcasted_iota(jnp.int32, (TB, n_obj, P), 2)

    # best object per prior (ties -> lowest object index, like torch.max)
    omax3 = jnp.max(overlap, axis=1, keepdims=True)                              # (TB,1,P)
    ofp3 = jnp.min(jnp.where(overlap == omax3, obj_iota, n_obj), axis=1, keepdims=True)

    # best prior per object, then force-assign it (last write wins on collisions,
    # matching the reference's sequential scatter).
    row_max = jnp.max(overlap, axis=2, keepdims=True)                            # (TB,n_obj,1)
    pfe = jnp.min(jnp.where(overlap == row_max, lane_iota, P), axis=2, keepdims=True)
    pfe = jnp.where(valid, pfe, P)             # padded objects force nothing
    assign3 = jnp.max(jnp.where(lane_iota == pfe, obj_iota, -1), axis=1, keepdims=True)
    forced3 = assign3 >= 0
    ofp3 = jnp.where(forced3, assign3, ofp3)
    omax3 = jnp.where(forced3, 1.0, omax3)

    # One-hot gather of the assigned object's box + label (exactly one hit per prior).
    # TODO(synk): fold the 5 gathers into one MXU dot_general once the
    # sublane-contraction orientation lowers cleanly in Mosaic.
    onehot = (obj_iota == ofp3).astype(f32)                                      # (TB,n_obj,P)
    gx1 = jnp.sum(bx1 * onehot, axis=1)                                          # (TB,P)
    gy1 = jnp.sum(by1 * onehot, axis=1)
    gx2 = jnp.sum(bx2 * onehot, axis=1)
    gy2 = jnp.sum(by2 * onehot, axis=1)
    lab = jnp.sum(labf * onehot, axis=1).astype(jnp.int32)                       # (TB,P)

    omax = omax3[:, 0, :]                                                        # (TB,P)
    tc = jnp.where(omax < threshold, 0, lab)          # background below threshold
    if n_valid < P:
        lane_ok = lax.broadcasted_iota(jnp.int32, (TB, P), 1) < n_valid
        tc = jnp.where(lane_ok, tc, 0)

    # ---- encode matched boxes: xy -> cxcywh -> gcxgcy (prior consts precomputed) ----
    pcx = pr[4:5, :]
    pcy = pr[5:6, :]
    r10w = pr[6:7, :]
    r10h = pr[7:8, :]
    lpw = pr[8:9, :]
    lph = pr[9:10, :]
    cx = (gx1 + gx2) * 0.5
    cy = (gy1 + gy2) * 0.5
    w = jnp.maximum(gx2 - gx1, 1e-8)   # guard degenerate / padded boxes before log
    h = jnp.maximum(gy2 - gy1, 1e-8)
    tl_cx = (cx - pcx) * r10w
    tl_cy = (cy - pcy) * r10h
    tl_w = (jnp.log(w) - lpw) * 5.0
    tl_h = (jnp.log(h) - lph) * 5.0

    plocs = plocs_ref[...]                                                       # (TB,4,P)
    abs_err = (
        jnp.abs(plocs[:, 0, :] - tl_cx)
        + jnp.abs(plocs[:, 1, :] - tl_cy)
        + jnp.abs(plocs[:, 2, :] - tl_w)
        + jnp.abs(plocs[:, 3, :] - tl_h)
    )                                                                            # (TB,P)

    # ---- per-prior cross entropy (class axis on sublanes) ----
    scores = pscores_ref[...]                                                    # (TB,C,P)
    smax = jnp.max(scores, axis=1, keepdims=True)                                # (TB,1,P)
    lse = (smax + jnp.log(jnp.sum(jnp.exp(scores - smax), axis=1, keepdims=True)))[:, 0, :]
    cls_iota = lax.broadcasted_iota(jnp.int32, (TB, C, P), 1)
    sel = jnp.sum(jnp.where(cls_iota == tc[:, None, :], scores, 0.0), axis=1)    # (TB,P)
    ce = lse - sel

    posf = (tc != 0).astype(f32)                                                 # (TB,P)
    conf_neg = ce * (1.0 - posf)
    if n_valid < P:
        conf_neg = jnp.where(lane_ok, conf_neg, 0.0)

    # ---- per-image reductions ----
    n_pos = jnp.sum(posf, axis=1, keepdims=True)                                 # (TB,1)
    ce_pos = jnp.sum(ce * posf, axis=1, keepdims=True)
    l1_pos = jnp.sum(abs_err * posf, axis=1, keepdims=True)

    # ---- hard-negative mining (per-image top-k sum) via threshold bisection ----
    # Replaces v1's XLA descending sort + (N,P) HBM round trip; exact up to
    # ~2^-30 relative residual at the k-th value (ties handled by the
    # correction term, matching the reference which includes zero entries).
    k_hard = jnp.float32(neg_pos_ratio) * n_pos                                  # (TB,1)
    hi0 = jnp.max(conf_neg, axis=1, keepdims=True)
    lo0 = jnp.zeros_like(hi0)

    def _bisect(_, lohi):
        lo, hi = lohi
        mid = 0.5 * (lo + hi)
        cnt = jnp.sum((conf_neg > mid).astype(f32), axis=1, keepdims=True)
        take = cnt >= k_hard           # k-th largest value is still above mid
        return jnp.where(take, mid, lo), jnp.where(take, hi, mid)

    _, thr = lax.fori_loop(0, n_bisect, _bisect, (lo0, hi0))
    gt_thr = (conf_neg > thr).astype(f32)
    cnt_gt = jnp.sum(gt_thr, axis=1, keepdims=True)
    sum_gt = jnp.sum(conf_neg * gt_thr, axis=1, keepdims=True)
    hard_neg = sum_gt + jnp.maximum(k_hard - cnt_gt, 0.0) * thr   # ties / residual

    # ---- pack per-image stats into one lane-dense row ----
    lane128 = lax.broadcasted_iota(jnp.int32, (TB, 128), 1)
    stats = (
        jnp.where(lane128 == 0, n_pos, 0.0)
        + jnp.where(lane128 == 1, ce_pos, 0.0)
        + jnp.where(lane128 == 2, l1_pos, 0.0)
        + jnp.where(lane128 == 3, hard_neg, 0.0)
    )
    stats_ref[0] = stats


# ---------------------------------------------------------------------------
# Wrapper
# ---------------------------------------------------------------------------
def multibox_loss(
    predicted_locs,     # (N, P, 4) f32
    predicted_scores,   # (N, P, C) f32
    boxes,              # (N, n_obj, 4) f32, xy coords
    labels,             # (N, n_obj) int, 1..C-1 (<=0 marks a padded object)
    priors_cxcy,        # (P, 4) f32, cxcywh
    threshold=0.5,
    neg_pos_ratio=3,
    alpha=1.0,
):
    N, P, _ = predicted_locs.shape
    C = predicted_scores.shape[2]
    n_obj = boxes.shape[1]

    # Pad the prior axis to a multiple of 128 (lane alignment); pad priors are
    # far outside [0,1] so their IoU with any gt box is 0 (background).
    p_pad = ((P + 127) // 128) * 128
    priors_cxcy = priors_cxcy.astype(jnp.float32)
    predicted_locs = predicted_locs.astype(jnp.float32)
    predicted_scores = predicted_scores.astype(jnp.float32)
    if p_pad != P:
        pad = p_pad - P
        pad_pr = jnp.tile(jnp.array([[2.0, 2.0, 0.5, 0.5]], jnp.float32), (pad, 1))
        priors_cxcy = jnp.concatenate([priors_cxcy, pad_pr], axis=0)
        predicted_locs = jnp.pad(predicted_locs, ((0, 0), (0, pad), (0, 0)))
        predicted_scores = jnp.pad(predicted_scores, ((0, 0), (0, pad), (0, 0)))

    pxy = cxcy_to_xy(priors_cxcy)                                  # (p_pad, 4)
    priors_packed = jnp.stack(
        [
            pxy[:, 0], pxy[:, 1], pxy[:, 2], pxy[:, 3],
            priors_cxcy[:, 0], priors_cxcy[:, 1],
            10.0 / priors_cxcy[:, 2], 10.0 / priors_cxcy[:, 3],
            jnp.log(priors_cxcy[:, 2]), jnp.log(priors_cxcy[:, 3]),
        ],
        axis=0,
    ).astype(jnp.float32)                                          # (10, p_pad)

    # Coordinate-/class-major layout for lane-dense in-kernel compute.
    # allow_input_fusion (below) lets XLA fold this relayout into the kernel's
    # input stream instead of materializing an extra HBM pass.
    # TODO(synk): have the detection head emit (N, 4, P)/(N, C, P) directly.
    plocs_t = jnp.transpose(predicted_locs, (0, 2, 1))             # (N, 4, p_pad)
    pscores_t = jnp.transpose(predicted_scores, (0, 2, 1))         # (N, C, p_pad)
    gt = jnp.concatenate(
        [boxes.astype(jnp.float32), labels.astype(jnp.float32)[..., None]], axis=-1
    )                                                              # (N, n_obj, 5)

    vmem_cap = _vmem_capacity_bytes()
    TB, vmem_limit = _pick_tiling(N, p_pad, C, n_obj, vmem_cap, prefer_split=_is_v7x())
    n_steps = N // TB

    kernel = functools.partial(
        _multibox_kernel,
        n_valid=P,
        threshold=float(threshold),
        neg_pos_ratio=int(neg_pos_ratio),
    )

    grid_spec = pltpu.PrefetchScalarGridSpec(
        num_scalar_prefetch=0,
        grid=(n_steps,),
        in_specs=[
            pl.BlockSpec((TB, n_obj, 5), lambda b: (b, 0, 0)),
            pl.BlockSpec((10, p_pad), lambda b: (0, 0)),
            pl.BlockSpec((TB, 4, p_pad), lambda b: (b, 0, 0)),
            pl.BlockSpec((TB, C, p_pad), lambda b: (b, 0, 0)),
        ],
        # (n_steps, TB, 128): the block's minor two dims always equal the array
        # dims, so any TB (incl. 1 for awkward batches) is layout-legal.
        out_specs=pl.BlockSpec((1, TB, 128), lambda b: (b, 0, 0)),
    )

    cost = pl.CostEstimate(
        flops=int(N * p_pad * (14 * n_obj + 6 * C + 150)),
        transcendentals=int(N * p_pad * (C + 3)),
        bytes_accessed=int(
            N * (C + 4) * p_pad * 4 + N * n_obj * 5 * 4 + 10 * p_pad * 4 + N * 128 * 4
        ),
    )

    stats = pl.pallas_call(
        kernel,
        out_shape=jax.ShapeDtypeStruct((n_steps, TB, 128), jnp.float32),
        grid_spec=grid_spec,
        compiler_params=pltpu.CompilerParams(
            dimension_semantics=("parallel",),
            vmem_limit_bytes=vmem_limit,
            allow_input_fusion=[False, False, True, True],
        ),
        cost_estimate=cost,
    )(gt, priors_packed, plocs_t, pscores_t)

    stats = stats.reshape(N, 128)
    n_pos_total = jnp.maximum(jnp.sum(stats[:, 0]), 1.0)   # guard all-background batches
    conf_pos_sum = jnp.sum(stats[:, 1])
    loc_abs_sum = jnp.sum(stats[:, 2])
    hard_neg_sum = jnp.sum(stats[:, 3])

    conf_loss = (hard_neg_sum + conf_pos_sum) / n_pos_total
    loc_loss = loc_abs_sum / (4.0 * n_pos_total)            # L1Loss mean over (n_pos, 4)
    return conf_loss + alpha * loc_loss


# ---------------------------------------------------------------------------
# Demo
# ---------------------------------------------------------------------------
if __name__ == "__main__":
    N = 2          # batch
    n_obj = 3      # ground-truth objects per image (fixed for the synthetic test)
    P = 256        # number of prior boxes
    C = 8          # number of classes (incl. background = 0)

    priors_cxcy = make_priors(grid=16, wh=0.2)  # (256, 4)

    key = jax.random.PRNGKey(0)
    k1, k2, k3, k4, k5 = jax.random.split(key, 5)
    centers = jax.random.uniform(k1, (N, n_obj, 2), minval=0.25, maxval=0.75)
    sizes = jax.random.uniform(k2, (N, n_obj, 2), minval=0.1, maxval=0.3)
    gt_boxes = jnp.concatenate([centers - sizes / 2.0, centers + sizes / 2.0], axis=-1)
    gt_labels = jax.random.randint(k3, (N, n_obj), 1, C)            # 1..C-1
    predicted_locs = jax.random.normal(k4, (N, P, 4), dtype=jnp.float32)
    predicted_scores = jax.random.normal(k5, (N, P, C), dtype=jnp.float32)

    loss = multibox_loss(
        predicted_locs,
        predicted_scores,
        gt_boxes,
        gt_labels,
        priors_cxcy,
        threshold=0.5,
        neg_pos_ratio=3,
        alpha=1.0,
    )
    jax.block_until_ready(loss)
    print("KERNEL_OK")
</pallas_src>

<mosaic_0001>
module attributes {stable_mosaic.version = 11 : i64} {
  func.func @_multibox_kernel(%arg0: i32, %arg1: memref<2x3x5xf32, #tpu.memory_space<vmem>>, %arg2: memref<10x256xf32, #tpu.memory_space<vmem>>, %arg3: memref<2x4x256xf32, #tpu.memory_space<vmem>>, %arg4: memref<2x8x256xf32, #tpu.memory_space<vmem>>, %arg5: memref<1x2x128xf32, #tpu.memory_space<vmem>>) attributes {dimension_semantics = [#tpu.dimension_semantics<parallel>], iteration_bounds = array<i64: 1>, scalar_prefetch = 0 : i64, scratch_operands = 0 : i64, tpu.core_type = #tpu.core_type<tc>, window_params = [{transform_indices = @transform_0, window_bounds = array<i64: 2, 3, 5>}, {pipeline_mode = #tpu.pipeline_mode<synchronous>, transform_indices = @transform_1, window_bounds = array<i64: 10, 256>}, {transform_indices = @transform_2, window_bounds = array<i64: 2, 4, 256>}, {transform_indices = @transform_3, window_bounds = array<i64: 2, 8, 256>}, {transform_indices = @transform_4, window_bounds = array<i64: 1, 2, 128>}]} {
    %c0 = arith.constant 0 : index
    %c0_0 = arith.constant 0 : index
    %c0_1 = arith.constant 0 : index
    %0 = vector.load %arg1[%c0, %c0_0, %c0_1] : memref<2x3x5xf32, #tpu.memory_space<vmem>>, vector<2x3x5xf32>
    %c0_2 = arith.constant 0 : index
    %c0_3 = arith.constant 0 : index
    %1 = vector.load %arg2[%c0_2, %c0_3] : memref<10x256xf32, #tpu.memory_space<vmem>>, vector<10x256xf32>
    %2 = vector.extract_strided_slice %0 {offsets = [0, 0, 0], sizes = [2, 3, 1], strides = [1, 1, 1]} : vector<2x3x5xf32> to vector<2x3x1xf32>
    %3 = vector.extract_strided_slice %0 {offsets = [0, 0, 1], sizes = [2, 3, 1], strides = [1, 1, 1]} : vector<2x3x5xf32> to vector<2x3x1xf32>
    %4 = vector.extract_strided_slice %0 {offsets = [0, 0, 2], sizes = [2, 3, 1], strides = [1, 1, 1]} : vector<2x3x5xf32> to vector<2x3x1xf32>
    %5 = vector.extract_strided_slice %0 {offsets = [0, 0, 3], sizes = [2, 3, 1], strides = [1, 1, 1]} : vector<2x3x5xf32> to vector<2x3x1xf32>
    %6 = vector.extract_strided_slice %0 {offsets = [0, 0, 4], sizes = [2, 3, 1], strides = [1, 1, 1]} : vector<2x3x5xf32> to vector<2x3x1xf32>
    %cst = arith.constant 5.000000e-01 : f32
    %7 = vector.broadcast %cst : f32 to vector<2x3x1xf32>
    %8 = arith.cmpf ogt, %6, %7 : vector<2x3x1xf32>
    %9 = vector.extract_strided_slice %1 {offsets = [0, 0], sizes = [1, 256], strides = [1, 1]} : vector<10x256xf32> to vector<1x256xf32>
    %10 = vector.extract_strided_slice %1 {offsets = [1, 0], sizes = [1, 256], strides = [1, 1]} : vector<10x256xf32> to vector<1x256xf32>
    %11 = vector.extract_strided_slice %1 {offsets = [2, 0], sizes = [1, 256], strides = [1, 1]} : vector<10x256xf32> to vector<1x256xf32>
    %12 = vector.extract_strided_slice %1 {offsets = [3, 0], sizes = [1, 256], strides = [1, 1]} : vector<10x256xf32> to vector<1x256xf32>
    %13 = vector.shape_cast %11 : vector<1x256xf32> to vector<1x1x256xf32>
    %14 = vector.broadcast %4 : vector<2x3x1xf32> to vector<2x3x256xf32>
    %15 = vector.broadcast %13 : vector<1x1x256xf32> to vector<2x3x256xf32>
    %16 = arith.minimumf %14, %15 : vector<2x3x256xf32>
    %17 = vector.shape_cast %9 : vector<1x256xf32> to vector<1x1x256xf32>
    %18 = vector.broadcast %2 : vector<2x3x1xf32> to vector<2x3x256xf32>
    %19 = vector.broadcast %17 : vector<1x1x256xf32> to vector<2x3x256xf32>
    %20 = arith.maximumf %18, %19 : vector<2x3x256xf32>
    %21 = arith.subf %16, %20 : vector<2x3x256xf32>
    %cst_4 = arith.constant 0.000000e+00 : f32
    %22 = vector.broadcast %cst_4 : f32 to vector<2x3x256xf32>
    %23 = arith.maximumf %21, %22 : vector<2x3x256xf32>
    %24 = vector.shape_cast %12 : vector<1x256xf32> to vector<1x1x256xf32>
    %25 = vector.broadcast %5 : vector<2x3x1xf32> to vector<2x3x256xf32>
    %26 = vector.broadcast %24 : vector<1x1x256xf32> to vector<2x3x256xf32>
    %27 = arith.minimumf %25, %26 : vector<2x3x256xf32>
    %28 = vector.shape_cast %10 : vector<1x256xf32> to vector<1x1x256xf32>
    %29 = vector.broadcast %3 : vector<2x3x1xf32> to vector<2x3x256xf32>
    %30 = vector.broadcast %28 : vector<1x1x256xf32> to vector<2x3x256xf32>
    %31 = arith.maximumf %29, %30 : vector<2x3x256xf32>
    %32 = arith.subf %27, %31 : vector<2x3x256xf32>
    %cst_5 = arith.constant 0.000000e+00 : f32
    %33 = vector.broadcast %cst_5 : f32 to vector<2x3x256xf32>
    %34 = arith.maximumf %32, %33 : vector<2x3x256xf32>
    %35 = arith.mulf %23, %34 : vector<2x3x256xf32>
    %36 = arith.subf %4, %2 : vector<2x3x1xf32>
    %37 = arith.subf %5, %3 : vector<2x3x1xf32>
    %38 = arith.mulf %36, %37 : vector<2x3x1xf32>
    %39 = arith.subf %11, %9 : vector<1x256xf32>
    %40 = arith.subf %12, %10 : vector<1x256xf32>
    %41 = arith.mulf %39, %40 : vector<1x256xf32>
    %42 = vector.shape_cast %41 : vector<1x256xf32> to vector<1x1x256xf32>
    %43 = vector.broadcast %38 : vector<2x3x1xf32> to vector<2x3x256xf32>
    %44 = vector.broadcast %42 : vector<1x1x256xf32> to vector<2x3x256xf32>
    %45 = arith.addf %43, %44 : vector<2x3x256xf32>
    %46 = arith.subf %45, %35 : vector<2x3x256xf32>
    %47 = arith.divf %35, %46 : vector<2x3x256xf32>
    %cst_6 = arith.constant -1.000000e+00 : f32
    %48 = vector.shape_cast %8 : vector<2x3x1xi1> to vector<2x3x1xi1>
    %49 = vector.broadcast %48 : vector<2x3x1xi1> to vector<2x3x256xi1>
    %50 = vector.broadcast %cst_6 : f32 to vector<2x3x256xf32>
    %51 = arith.select %49, %47, %50 : vector<2x3x256xi1>, vector<2x3x256xf32>
    %52 = tpu.iota {dimensions = array<i32: 1>} : vector<2x3x256xi32>
    %53 = tpu.iota {dimensions = array<i32: 2>} : vector<2x3x256xi32>
    %cst_7 = arith.constant dense<0xFF800000> : vector<2x256xf32>
    %54 = vector.multi_reduction <maximumf>, %51, %cst_7 [1] : vector<2x3x256xf32> to vector<2x256xf32>
    %55 = vector.shape_cast %54 : vector<2x256xf32> to vector<2x1x256xf32>
    %56 = vector.broadcast %55 : vector<2x1x256xf32> to vector<2x3x256xf32>
    %57 = arith.cmpf oeq, %51, %56 : vector<2x3x256xf32>
    %c3_i32 = arith.constant 3 : i32
    %58 = vector.broadcast %c3_i32 : i32 to vector<2x3x256xi32>
    %59 = arith.select %57, %52, %58 : vector<2x3x256xi1>, vector<2x3x256xi32>
    %cst_8 = arith.constant dense<2147483647> : vector<2x256xi32>
    %60 = vector.multi_reduction <minsi>, %59, %cst_8 [1] : vector<2x3x256xi32> to vector<2x256xi32>
    %61 = vector.shape_cast %60 : vector<2x256xi32> to vector<2x1x256xi32>
    %cst_9 = arith.constant dense<0xFF800000> : vector<2x3xf32>
    %62 = vector.multi_reduction <maximumf>, %51, %cst_9 [2] : vector<2x3x256xf32> to vector<2x3xf32>
    %63 = vector.shape_cast %62 : vector<2x3xf32> to vector<2x3x1xf32>
    %64 = vector.broadcast %63 : vector<2x3x1xf32> to vector<2x3x256xf32>
    %65 = arith.cmpf oeq, %51, %64 : vector<2x3x256xf32>
    %c256_i32 = arith.constant 256 : i32
    %66 = vector.broadcast %c256_i32 : i32 to vector<2x3x256xi32>
    %67 = arith.select %65, %53, %66 : vector<2x3x256xi1>, vector<2x3x256xi32>
    %cst_10 = arith.constant dense<2147483647> : vector<2x3xi32>
    %68 = vector.multi_reduction <minsi>, %67, %cst_10 [2] : vector<2x3x256xi32> to vector<2x3xi32>
    %69 = vector.shape_cast %68 : vector<2x3xi32> to vector<2x3x1xi32>
    %c256_i32_11 = arith.constant 256 : i32
    %70 = vector.broadcast %c256_i32_11 : i32 to vector<2x3x1xi32>
    %71 = arith.select %8, %69, %70 : vector<2x3x1xi1>, vector<2x3x1xi32>
    %72 = vector.broadcast %71 : vector<2x3x1xi32> to vector<2x3x256xi32>
    %73 = arith.cmpi eq, %53, %72 : vector<2x3x256xi32>
    %c-1_i32 = arith.constant -1 : i32
    %74 = vector.broadcast %c-1_i32 : i32 to vector<2x3x256xi32>
    %75 = arith.select %73, %52, %74 : vector<2x3x256xi1>, vector<2x3x256xi32>
    %cst_12 = arith.constant dense<-2147483648> : vector<2x256xi32>
    %76 = vector.multi_reduction <maxsi>, %75, %cst_12 [1] : vector<2x3x256xi32> to vector<2x256xi32>
    %77 = vector.shape_cast %76 : vector<2x256xi32> to vector<2x1x256xi32>
    %c0_i32 = arith.constant 0 : i32
    %78 = vector.broadcast %c0_i32 : i32 to vector<2x1x256xi32>
    %79 = arith.cmpi sge, %77, %78 : vector<2x1x256xi32>
    %80 = arith.select %79, %77, %61 : vector<2x1x256xi1>, vector<2x1x256xi32>
    %cst_13 = arith.constant 1.000000e+00 : f32
    %81 = vector.broadcast %cst_13 : f32 to vector<2x1x256xf32>
    %82 = arith.select %79, %81, %55 : vector<2x1x256xi1>, vector<2x1x256xf32>
    %83 = vector.broadcast %80 : vector<2x1x256xi32> to vector<2x3x256xi32>
    %84 = arith.cmpi eq, %52, %83 : vector<2x3x256xi32>
    %85 = arith.extui %84 : vector<2x3x256xi1> to vector<2x3x256xi32>
    %86 = arith.sitofp %85 : vector<2x3x256xi32> to vector<2x3x256xf32>
    %87 = vector.broadcast %2 : vector<2x3x1xf32> to vector<2x3x256xf32>
    %88 = arith.mulf %87, %86 : vector<2x3x256xf32>
    %cst_14 = arith.constant dense<0.000000e+00> : vector<2x256xf32>
    %89 = vector.multi_reduction <add>, %88, %cst_14 [1] : vector<2x3x256xf32> to vector<2x256xf32>
    %90 = vector.broadcast %3 : vector<2x3x1xf32> to vector<2x3x256xf32>
    %91 = arith.mulf %90, %86 : vector<2x3x256xf32>
    %cst_15 = arith.constant dense<0.000000e+00> : vector<2x256xf32>
    %92 = vector.multi_reduction <add>, %91, %cst_15 [1] : vector<2x3x256xf32> to vector<2x256xf32>
    %93 = vector.broadcast %4 : vector<2x3x1xf32> to vector<2x3x256xf32>
    %94 = arith.mulf %93, %86 : vector<2x3x256xf32>
    %cst_16 = arith.constant dense<0.000000e+00> : vector<2x256xf32>
    %95 = vector.multi_reduction <add>, %94, %cst_16 [1] : vector<2x3x256xf32> to vector<2x256xf32>
    %96 = vector.broadcast %5 : vector<2x3x1xf32> to vector<2x3x256xf32>
    %97 = arith.mulf %96, %86 : vector<2x3x256xf32>
    %cst_17 = arith.constant dense<0.000000e+00> : vector<2x256xf32>
    %98 = vector.multi_reduction <add>, %97, %cst_17 [1] : vector<2x3x256xf32> to vector<2x256xf32>
    %99 = vector.broadcast %6 : vector<2x3x1xf32> to vector<2x3x256xf32>
    %100 = arith.mulf %99, %86 : vector<2x3x256xf32>
    %cst_18 = arith.constant dense<0.000000e+00> : vector<2x256xf32>
    %101 = vector.multi_reduction <add>, %100, %cst_18 [1] : vector<2x3x256xf32> to vector<2x256xf32>
    %102 = arith.fptosi %101 : vector<2x256xf32> to vector<2x256xi32>
    %103 = vector.shape_cast %82 : vector<2x1x256xf32> to vector<2x256xf32>
    %cst_19 = arith.constant 5.000000e-01 : f32
    %104 = vector.broadcast %cst_19 : f32 to vector<2x256xf32>
    %105 = arith.cmpf olt, %103, %104 : vector<2x256xf32>
    %c0_i32_20 = arith.constant 0 : i32
    %106 = vector.broadcast %c0_i32_20 : i32 to vector<2x256xi32>
    %107 = arith.select %105, %106, %102 : vector<2x256xi1>, vector<2x256xi32>
    %108 = vector.extract_strided_slice %1 {offsets = [4, 0], sizes = [1, 256], strides = [1, 1]} : vector<10x256xf32> to vector<1x256xf32>
    %109 = vector.extract_strided_slice %1 {offsets = [5, 0], sizes = [1, 256], strides = [1, 1]} : vector<10x256xf32> to vector<1x256xf32>
    %110 = vector.extract_strided_slice %1 {offsets = [6, 0], sizes = [1, 256], strides = [1, 1]} : vector<10x256xf32> to vector<1x256xf32>
    %111 = vector.extract_strided_slice %1 {offsets = [7, 0], sizes = [1, 256], strides = [1, 1]} : vector<10x256xf32> to vector<1x256xf32>
    %112 = vector.extract_strided_slice %1 {offsets = [8, 0], sizes = [1, 256], strides = [1, 1]} : vector<10x256xf32> to vector<1x256xf32>
    %113 = vector.extract_strided_slice %1 {offsets = [9, 0], sizes = [1, 256], strides = [1, 1]} : vector<10x256xf32> to vector<1x256xf32>
    %114 = arith.addf %89, %95 : vector<2x256xf32>
    %cst_21 = arith.constant 5.000000e-01 : f32
    %115 = vector.broadcast %cst_21 : f32 to vector<2x256xf32>
    %116 = arith.mulf %114, %115 : vector<2x256xf32>
    %117 = arith.addf %92, %98 : vector<2x256xf32>
    %cst_22 = arith.constant 5.000000e-01 : f32
    %118 = vector.broadcast %cst_22 : f32 to vector<2x256xf32>
    %119 = arith.mulf %117, %118 : vector<2x256xf32>
    %120 = arith.subf %95, %89 : vector<2x256xf32>
    %cst_23 = arith.constant 9.99999993E-9 : f32
    %121 = vector.broadcast %cst_23 : f32 to vector<2x256xf32>
    %122 = arith.maximumf %120, %121 : vector<2x256xf32>
    %123 = arith.subf %98, %92 : vector<2x256xf32>
    %cst_24 = arith.constant 9.99999993E-9 : f32
    %124 = vector.broadcast %cst_24 : f32 to vector<2x256xf32>
    %125 = arith.maximumf %123, %124 : vector<2x256xf32>
    %126 = vector.broadcast %108 : vector<1x256xf32> to vector<2x256xf32>
    %127 = arith.subf %116, %126 : vector<2x256xf32>
    %128 = vector.broadcast %110 : vector<1x256xf32> to vector<2x256xf32>
    %129 = arith.mulf %127, %128 : vector<2x256xf32>
    %130 = vector.broadcast %109 : vector<1x256xf32> to vector<2x256xf32>
    %131 = arith.subf %119, %130 : vector<2x256xf32>
    %132 = vector.broadcast %111 : vector<1x256xf32> to vector<2x256xf32>
    %133 = arith.mulf %131, %132 : vector<2x256xf32>
    %134 = math.log %122 : vector<2x256xf32>
    %135 = vector.broadcast %112 : vector<1x256xf32> to vector<2x256xf32>
    %136 = arith.subf %134, %135 : vector<2x256xf32>
    %cst_25 = arith.constant 5.000000e+00 : f32
    %137 = vector.broadcast %cst_25 : f32 to vector<2x256xf32>
    %138 = arith.mulf %136, %137 : vector<2x256xf32>
    %139 = math.log %125 : vector<2x256xf32>
    %140 = vector.broadcast %113 : vector<1x256xf32> to vector<2x256xf32>
    %141 = arith.subf %139, %140 : vector<2x256xf32>
    %cst_26 = arith.constant 5.000000e+00 : f32
    %142 = vector.broadcast %cst_26 : f32 to vector<2x256xf32>
    %143 = arith.mulf %141, %142 : vector<2x256xf32>
    %c0_27 = arith.constant 0 : index
    %c0_28 = arith.constant 0 : index
    %c0_29 = arith.constant 0 : index
    %144 = vector.load %arg3[%c0_27, %c0_28, %c0_29] : memref<2x4x256xf32, #tpu.memory_space<vmem>>, vector<2x4x256xf32>
    %145 = vector.extract_strided_slice %144 {offsets = [0, 0, 0], sizes = [2, 1, 256], strides = [1, 1, 1]} : vector<2x4x256xf32> to vector<2x1x256xf32>
    %146 = vector.shape_cast %145 : vector<2x1x256xf32> to vector<2x256xf32>
    %147 = arith.subf %146, %129 : vector<2x256xf32>
    %148 = math.absf %147 : vector<2x256xf32>
    %149 = vector.extract_strided_slice %144 {offsets = [0, 1, 0], sizes = [2, 1, 256], strides = [1, 1, 1]} : vector<2x4x256xf32> to vector<2x1x256xf32>
    %150 = vector.shape_cast %149 : vector<2x1x256xf32> to vector<2x256xf32>
    %151 = arith.subf %150, %133 : vector<2x256xf32>
    %152 = math.absf %151 : vector<2x256xf32>
    %153 = arith.addf %148, %152 : vector<2x256xf32>
    %154 = vector.extract_strided_slice %144 {offsets = [0, 2, 0], sizes = [2, 1, 256], strides = [1, 1, 1]} : vector<2x4x256xf32> to vector<2x1x256xf32>
    %155 = vector.shape_cast %154 : vector<2x1x256xf32> to vector<2x256xf32>
    %156 = arith.subf %155, %138 : vector<2x256xf32>
    %157 = math.absf %156 : vector<2x256xf32>
    %158 = arith.addf %153, %157 : vector<2x256xf32>
    %159 = vector.extract_strided_slice %144 {offsets = [0, 3, 0], sizes = [2, 1, 256], strides = [1, 1, 1]} : vector<2x4x256xf32> to vector<2x1x256xf32>
    %160 = vector.shape_cast %159 : vector<2x1x256xf32> to vector<2x256xf32>
    %161 = arith.subf %160, %143 : vector<2x256xf32>
    %162 = math.absf %161 : vector<2x256xf32>
    %163 = arith.addf %158, %162 : vector<2x256xf32>
    %c0_30 = arith.constant 0 : index
    %c0_31 = arith.constant 0 : index
    %c0_32 = arith.constant 0 : index
    %164 = vector.load %arg4[%c0_30, %c0_31, %c0_32] : memref<2x8x256xf32, #tpu.memory_space<vmem>>, vector<2x8x256xf32>
    %cst_33 = arith.constant dense<0xFF800000> : vector<2x256xf32>
    %165 = vector.multi_reduction <maximumf>, %164, %cst_33 [1] : vector<2x8x256xf32> to vector<2x256xf32>
    %166 = vector.shape_cast %165 : vector<2x256xf32> to vector<2x1x256xf32>
    %167 = vector.broadcast %166 : vector<2x1x256xf32> to vector<2x8x256xf32>
    %168 = arith.subf %164, %167 : vector<2x8x256xf32>
    %169 = math.exp %168 : vector<2x8x256xf32>
    %cst_34 = arith.constant dense<0.000000e+00> : vector<2x256xf32>
    %170 = vector.multi_reduction <add>, %169, %cst_34 [1] : vector<2x8x256xf32> to vector<2x256xf32>
    %171 = vector.shape_cast %170 : vector<2x256xf32> to vector<2x1x256xf32>
    %172 = math.log %171 : vector<2x1x256xf32>
    %173 = arith.addf %166, %172 : vector<2x1x256xf32>
    %174 = vector.shape_cast %173 : vector<2x1x256xf32> to vector<2x256xf32>
    %175 = tpu.iota {dimensions = array<i32: 1>} : vector<2x8x256xi32>
    %176 = vector.shape_cast %107 : vector<2x256xi32> to vector<2x1x256xi32>
    %177 = vector.broadcast %176 : vector<2x1x256xi32> to vector<2x8x256xi32>
    %178 = arith.cmpi eq, %175, %177 : vector<2x8x256xi32>
    %cst_35 = arith.constant 0.000000e+00 : f32
    %179 = vector.broadcast %cst_35 : f32 to vector<2x8x256xf32>
    %180 = arith.select %178, %164, %179 : vector<2x8x256xi1>, vector<2x8x256xf32>
    %cst_36 = arith.constant dense<0.000000e+00> : vector<2x256xf32>
    %181 = vector.multi_reduction <add>, %180, %cst_36 [1] : vector<2x8x256xf32> to vector<2x256xf32>
    %182 = arith.subf %174, %181 : vector<2x256xf32>
    %c0_i32_37 = arith.constant 0 : i32
    %183 = vector.broadcast %c0_i32_37 : i32 to vector<2x256xi32>
    %184 = arith.cmpi ne, %107, %183 : vector<2x256xi32>
    %185 = arith.extui %184 : vector<2x256xi1> to vector<2x256xi32>
    %186 = arith.sitofp %185 : vector<2x256xi32> to vector<2x256xf32>
    %cst_38 = arith.constant 1.000000e+00 : f32
    %187 = vector.broadcast %cst_38 : f32 to vector<2x256xf32>
    %188 = arith.subf %187, %186 : vector<2x256xf32>
    %189 = arith.mulf %182, %188 : vector<2x256xf32>
    %cst_39 = arith.constant dense<0.000000e+00> : vector<2xf32>
    %190 = vector.multi_reduction <add>, %186, %cst_39 [1] : vector<2x256xf32> to vector<2xf32>
    %191 = vector.shape_cast %190 : vector<2xf32> to vector<2x1xf32>
    %192 = arith.mulf %182, %186 : vector<2x256xf32>
    %cst_40 = arith.constant dense<0.000000e+00> : vector<2xf32>
    %193 = vector.multi_reduction <add>, %192, %cst_40 [1] : vector<2x256xf32> to vector<2xf32>
    %194 = vector.shape_cast %193 : vector<2xf32> to vector<2x1xf32>
    %195 = arith.mulf %163, %186 : vector<2x256xf32>
    %cst_41 = arith.constant dense<0.000000e+00> : vector<2xf32>
    %196 = vector.multi_reduction <add>, %195, %cst_41 [1] : vector<2x256xf32> to vector<2xf32>
    %197 = vector.shape_cast %196 : vector<2xf32> to vector<2x1xf32>
    %cst_42 = arith.constant 3.000000e+00 : f32
    %198 = vector.broadcast %cst_42 : f32 to vector<2x1xf32>
    %199 = arith.mulf %198, %191 : vector<2x1xf32>
    %cst_43 = arith.constant dense<0xFF800000> : vector<2xf32>
    %200 = vector.multi_reduction <maximumf>, %189, %cst_43 [1] : vector<2x256xf32> to vector<2xf32>
    %201 = vector.shape_cast %200 : vector<2xf32> to vector<2x1xf32>
    %cst_44 = arith.constant 0.000000e+00 : f32
    %202 = vector.broadcast %cst_44 : f32 to vector<2x1xf32>
    %c0_i32_45 = arith.constant 0 : i32
    %c30_i32 = arith.constant 30 : i32
    %203 = arith.addi %c0_i32_45, %c30_i32 : i32
    %c1_i32 = arith.constant 1 : i32
    %204:2 = scf.for %arg6 = %c0_i32_45 to %203 step %c1_i32 iter_args(%arg7 = %202, %arg8 = %201) -> (vector<2x1xf32>, vector<2x1xf32>)  : i32 {
      %250 = arith.addf %arg7, %arg8 : vector<2x1xf32>
      %cst_59 = arith.constant 5.000000e-01 : f32
      %251 = vector.broadcast %cst_59 : f32 to vector<2x1xf32>
      %252 = arith.mulf %251, %250 : vector<2x1xf32>
      %253 = vector.broadcast %252 : vector<2x1xf32> to vector<2x256xf32>
      %254 = arith.cmpf ogt, %189, %253 : vector<2x256xf32>
      %255 = arith.extui %254 : vector<2x256xi1> to vector<2x256xi32>
      %256 = arith.sitofp %255 : vector<2x256xi32> to vector<2x256xf32>
      %cst_60 = arith.constant dense<0.000000e+00> : vector<2xf32>
      %257 = vector.multi_reduction <add>, %256, %cst_60 [1] : vector<2x256xf32> to vector<2xf32>
      %258 = vector.shape_cast %257 : vector<2xf32> to vector<2x1xf32>
      %259 = arith.cmpf oge, %258, %199 : vector<2x1xf32>
      %260 = arith.select %259, %252, %arg7 : vector<2x1xi1>, vector<2x1xf32>
      %261 = arith.select %259, %arg8, %252 : vector<2x1xi1>, vector<2x1xf32>
      scf.yield %260, %261 : vector<2x1xf32>, vector<2x1xf32>
    }
    %205 = vector.broadcast %204#1 : vector<2x1xf32> to vector<2x256xf32>
    %206 = arith.cmpf ogt, %189, %205 : vector<2x256xf32>
    %207 = arith.extui %206 : vector<2x256xi1> to vector<2x256xi32>
    %208 = arith.sitofp %207 : vector<2x256xi32> to vector<2x256xf32>
    %cst_46 = arith.constant dense<0.000000e+00> : vector<2xf32>
    %209 = vector.multi_reduction <add>, %208, %cst_46 [1] : vector<2x256xf32> to vector<2xf32>
    %210 = vector.shape_cast %209 : vector<2xf32> to vector<2x1xf32>
    %211 = arith.mulf %189, %208 : vector<2x256xf32>
    %cst_47 = arith.constant dense<0.000000e+00> : vector<2xf32>
    %212 = vector.multi_reduction <add>, %211, %cst_47 [1] : vector<2x256xf32> to vector<2xf32>
    %213 = vector.shape_cast %212 : vector<2xf32> to vector<2x1xf32>
    %214 = arith.subf %199, %210 : vector<2x1xf32>
    %cst_48 = arith.constant 0.000000e+00 : f32
    %215 = vector.broadcast %cst_48 : f32 to vector<2x1xf32>
    %216 = arith.maximumf %214, %215 : vector<2x1xf32>
    %217 = arith.mulf %216, %204#1 : vector<2x1xf32>
    %218 = arith.addf %213, %217 : vector<2x1xf32>
    %219 = tpu.iota {dimensions = array<i32: 1>} : vector<2x128xi32>
    %c0_i32_49 = arith.constant 0 : i32
    %220 = vector.broadcast %c0_i32_49 : i32 to vector<2x128xi32>
    %221 = arith.cmpi eq, %219, %220 : vector<2x128xi32>
    %cst_50 = arith.constant 0.000000e+00 : f32
    %222 = vector.shape_cast %191 : vector<2x1xf32> to vector<2x1xf32>
    %223 = vector.broadcast %222 : vector<2x1xf32> to vector<2x128xf32>
    %224 = vector.broadcast %cst_50 : f32 to vector<2x128xf32>
    %225 = arith.select %221, %223, %224 : vector<2x128xi1>, vector<2x128xf32>
    %c1_i32_51 = arith.constant 1 : i32
    %226 = vector.broadcast %c1_i32_51 : i32 to vector<2x128xi32>
    %227 = arith.cmpi eq, %219, %226 : vector<2x128xi32>
    %cst_52 = arith.constant 0.000000e+00 : f32
    %228 = vector.shape_cast %194 : vector<2x1xf32> to vector<2x1xf32>
    %229 = vector.broadcast %228 : vector<2x1xf32> to vector<2x128xf32>
    %230 = vector.broadcast %cst_52 : f32 to vector<2x128xf32>
    %231 = arith.select %227, %229, %230 : vector<2x128xi1>, vector<2x128xf32>
    %232 = arith.addf %225, %231 : vector<2x128xf32>
    %c2_i32 = arith.constant 2 : i32
    %233 = vector.broadcast %c2_i32 : i32 to vector<2x128xi32>
    %234 = arith.cmpi eq, %219, %233 : vector<2x128xi32>
    %cst_53 = arith.constant 0.000000e+00 : f32
    %235 = vector.shape_cast %197 : vector<2x1xf32> to vector<2x1xf32>
    %236 = vector.broadcast %235 : vector<2x1xf32> to vector<2x128xf32>
    %237 = vector.broadcast %cst_53 : f32 to vector<2x128xf32>
    %238 = arith.select %234, %236, %237 : vector<2x128xi1>, vector<2x128xf32>
    %239 = arith.addf %232, %238 : vector<2x128xf32>
    %c3_i32_54 = arith.constant 3 : i32
    %240 = vector.broadcast %c3_i32_54 : i32 to vector<2x128xi32>
    %241 = arith.cmpi eq, %219, %240 : vector<2x128xi32>
    %cst_55 = arith.constant 0.000000e+00 : f32
    %242 = vector.shape_cast %218 : vector<2x1xf32> to vector<2x1xf32>
    %243 = vector.broadcast %242 : vector<2x1xf32> to vector<2x128xf32>
    %244 = vector.broadcast %cst_55 : f32 to vector<2x128xf32>
    %245 = arith.select %241, %243, %244 : vector<2x128xi1>, vector<2x128xf32>
    %246 = arith.addf %239, %245 : vector<2x128xf32>
    %c0_56 = arith.constant 0 : index
    %c0_57 = arith.constant 0 : index
    %c0_58 = arith.constant 0 : index
    %247 = vector.load %arg5[%c0_56, %c0_57, %c0_58] : memref<1x2x128xf32, #tpu.memory_space<vmem>>, vector<1x2x128xf32>
    %248 = vector.shape_cast %247 : vector<1x2x128xf32> to vector<2x128xf32>
    %249 = vector.shape_cast %246 : vector<2x128xf32> to vector<1x2x128xf32>
    tpu.vector_store %arg5[%c0_56, %c0_57, %c0_58], %249 {strides = array<i32>} : memref<1x2x128xf32, #tpu.memory_space<vmem>>, vector<1x2x128xf32>,
    return
  }
  func.func @transform_0(%arg0: i32) -> (i32, i32, i32) {
    %c0_i32 = arith.constant 0 : i32
    %c0_i32_0 = arith.constant 0 : i32
    %c0_i32_1 = arith.constant 0 : i32
    return %arg0, %c0_i32, %c0_i32_0 : i32, i32, i32
  }
  func.func @transform_1(%arg0: i32) -> (i32, i32) {
    %c0_i32 = arith.constant 0 : i32
    %c0_i32_0 = arith.constant 0 : i32
    %c0_i32_1 = arith.constant 0 : i32
    return %c0_i32, %c0_i32_0 : i32, i32
  }
  func.func @transform_2(%arg0: i32) -> (i32, i32, i32) {
    %c0_i32 = arith.constant 0 : i32
    %c0_i32_0 = arith.constant 0 : i32
    %c0_i32_1 = arith.constant 0 : i32
    return %arg0, %c0_i32, %c0_i32_0 : i32, i32, i32
  }
  func.func @transform_3(%arg0: i32) -> (i32, i32, i32) {
    %c0_i32 = arith.constant 0 : i32
    %c0_i32_0 = arith.constant 0 : i32
    %c0_i32_1 = arith.constant 0 : i32
    return %arg0, %c0_i32, %c0_i32_0 : i32, i32, i32
  }
  func.func @transform_4(%arg0: i32) -> (i32, i32, i32) {
    %c0_i32 = arith.constant 0 : i32
    %c0_i32_0 = arith.constant 0 : i32
    %c0_i32_1 = arith.constant 0 : i32
    return %arg0, %c0_i32, %c0_i32_0 : i32, i32, i32
  }
}

</mosaic_0001>

<llo_original>
// kernel: tpu_custom_call.1
$region0: #{tpu_custom_call.1}
  #allocation0 [shape = 'u32[]', space=smem, size = 0x4, offset = 0x4, fixed_abs, tag = 'smem constant byte address 0x4 - core index']
  #allocation1 [shape = 'u32[144,128]{1,0:T(1,128)}', space=vmem, size = 0x12000, scoped, tag = 'internal scratch']
  %s0 = inlined_call_operand.vmem [shape: f32[2,3,5], index: 0, kind: input, shape index: {}]
  %s1 = inlined_call_operand.hbm [shape: f32[10,256], index: 1, kind: input, shape index: {}]
  %s2 = inlined_call_operand.vmem [shape: f32[2,4,256], index: 2, kind: input, shape index: {}]
  %s3 = inlined_call_operand.hbm [shape: f32[2,8,256], index: 3, kind: input, shape index: {}]
  %s4 = inlined_call_operand.hbm [shape: f32[1,2,128], index: 4, kind: output, shape index: {}]
  %s5 = sld [smem:[#allocation0]]
  $region41: #{tpu_custom_call.1} parent=0
    _
  %s7 = ssub.s32 1, %s5
  %s8 = scalar_select 0, %s7, %s5
  $region1: #{tpu_custom_call.1} parent=0
    #allocation2 [shape = 'u8[16384]{0}', space=vmem, size = 0x4000, scoped, tag = 'input window, operand 1, single buffered']
    #allocation3 [shape = 's32[1]{0}', space=sflag, size = 0x4, scoped, tag = 'scoped memory for tpu_custom_call.1']
    #allocation4 [shape = 's32[1]{0}', space=sflag, size = 0x4, scoped, tag = 'scoped memory for tpu_custom_call.1']
    #allocation5 [shape = 'u8[16384]{0}', space=vmem, size = 0x4000, scoped, tag = 'input window, operand 3, single buffered']
    #allocation6 [shape = 's32[1]{0}', space=sflag, size = 0x4, scoped, tag = 'scoped memory for tpu_custom_call.1']
    #allocation7 [shape = 'u8[1024]{0}', space=vmem, size = 0x400, scoped, tag = 'output window, operand 0, single buffered']
    %9 = vsyncpa [#allocation3], 0
    %10 = vsyncpa [#allocation6], 0
    %11 = vsyncpa [#allocation4], 0
    // Predicated region
    $region2: #{tpu_custom_call.1} parent=1 // pred_check
      _
    $region3: #{tpu_custom_call.1} parent=1 // pred_check_branch
      %13 = sbr.rel (0) target = $region5
    $region4: #{tpu_custom_call.1} parent=1 // pred_region
      _
    $region5: #{tpu_custom_call.1} parent=1 // pred_fallthru
      _
    // Predicated region
    $region6: #{tpu_custom_call.1} parent=1 // pred_check
      _
    $region7: #{tpu_custom_call.1} parent=1 // pred_check_branch
      %15 = sbr.rel (0) target = $region9
    $region8: #{tpu_custom_call.1} parent=1 // pred_region
      %s17 = ssub.s32 512, 512
      %18 = vsyncadd [#allocation3], %s17
      %s19 = sshll.u32 [#allocation2], 4
      %s20 = int_to_ptr.vmem [resolvable:$true] %s19
      %25 = dma.hbm_to_vmem [thread:$0]  %s1, 512, %s20, [#allocation3], 256, 256, 16
    $region9: #{tpu_custom_call.1} parent=1 // pred_fallthru
      _
    // Predicated region
    $region10: #{tpu_custom_call.1} parent=1 // pred_check
      _
    $region11: #{tpu_custom_call.1} parent=1 // pred_check_branch
      %27 = sbr.rel (0) target = $region13
    $region12: #{tpu_custom_call.1} parent=1 // pred_region
      _
    $region13: #{tpu_custom_call.1} parent=1 // pred_fallthru
      _
    // Predicated region
    $region14: #{tpu_custom_call.1} parent=1 // pred_check
      _
    $region15: #{tpu_custom_call.1} parent=1 // pred_check_branch
      %29 = sbr.rel (0) target = $region17
    $region16: #{tpu_custom_call.1} parent=1 // pred_region
      %s31 = ssub.s32 512, 512
      %32 = vsyncadd [#allocation6], %s31
      %s33 = sshll.u32 [#allocation5], 4
      %s34 = int_to_ptr.vmem [resolvable:$true] %s33
      %39 = dma.hbm_to_vmem [thread:$0]  %s3, 512, %s34, [#allocation6], 256, 256, 16
    $region17: #{tpu_custom_call.1} parent=1 // pred_fallthru
      _
    // Predicated region
    $region18: #{tpu_custom_call.1} parent=1 // pred_check
      _
    $region19: #{tpu_custom_call.1} parent=1 // pred_check_branch
      %41 = sbr.rel (0) target = $region21
    $region20: #{tpu_custom_call.1} parent=1 // pred_region
      %42 = dma.done [#allocation3], 512
    $region21: #{tpu_custom_call.1} parent=1 // pred_fallthru
      _
    // Predicated region
    $region22: #{tpu_custom_call.1} parent=1 // pred_check
      _
    $region23: #{tpu_custom_call.1} parent=1 // pred_check_branch
      %44 = sbr.rel (0) target = $region25
    $region24: #{tpu_custom_call.1} parent=1 // pred_region
      %45 = dma.done [#allocation6], 512
    $region25: #{tpu_custom_call.1} parent=1 // pred_fallthru
      _
    %v46 = vld [vmem:[%s0] sm:$0x7]
    %v47 = vld [vmem:[%s0 + $0x4] sm:$0x7]
    %v48 = vld [vmem:[#allocation2] sm:$0xff]
    %v49 = vld [vmem:[#allocation2 + $0x8] sm:$0xff]
    %v50 = vld [vmem:[#allocation2 + $0x10] sm:$0x3]
    %v51 = vld [vmem:[#allocation2 + $0x18] sm:$0x3]
    %vm52 = vcmp.gt.f32.partialorder %v46, 0.5
    %vm53 = vcmp.gt.f32.partialorder %v47, 0.5
    %55 = vset.pattern.permute.xlu0 2
    %56 = vperm.xlu0 %55, %v46
    %v57 = vpop.permute.xlu0 %56
    %60 = vset.pattern.permute.xlu0 2
    %61 = vperm.xlu0 %60, %v47
    %v62 = vpop.permute.xlu0 %61
    %v64 = vlaneseq
    %v65 = vshrl.u32 %v64, 7
    %v66 = vsub.s32 2, %v65
    %v67 = vrot.slane %v48, %v66
    %v68 = vlaneseq
    %v69 = vshrl.u32 %v68, 7
    %v70 = vsub.s32 2, %v69
    %v71 = vrot.slane %v49, %v70
    %v72 = vmin.f32 %v57, %v67
    %v73 = vmin.f32 %v57, %v71
    %v74 = vmin.f32 %v62, %v67
    %v75 = vmin.f32 %v62, %v71
    %76 = vset.pattern.permute.xlu0 0
    %77 = vperm.xlu0 %76, %v46
    %v78 = vpop.permute.xlu0 %77
    %80 = vset.pattern.permute.xlu0 0
    %81 = vperm.xlu0 %80, %v47
    %v82 = vpop.permute.xlu0 %81
    %v84 = vlaneseq
    %v85 = vshrl.u32 %v84, 7
    %v86 = vsub.s32 0, %v85
    %v87 = vrot.slane %v48, %v86
    %v88 = vlaneseq
    %v89 = vshrl.u32 %v88, 7
    %v90 = vsub.s32 0, %v89
    %v91 = vrot.slane %v49, %v90
    %v92 = vmax.f32 %v78, %v87
    %v93 = vmax.f32 %v78, %v91
    %v94 = vmax.f32 %v82, %v87
    %v95 = vmax.f32 %v82, %v91
    %v96 = vsub.f32 %v72, %v92
    %v97 = vsub.f32 %v73, %v93
    %v98 = vsub.f32 %v74, %v94
    %v99 = vsub.f32 %v75, %v95
    %v100 = vmax.f32 %v96, 0.0
    %v101 = vmax.f32 %v97, 0.0
    %v102 = vmax.f32 %v98, 0.0
    %v103 = vmax.f32 %v99, 0.0
    %104 = vset.pattern.permute.xlu0 3
    %105 = vperm.xlu0 %104, %v46
    %v106 = vpop.permute.xlu0 %105
    %108 = vset.pattern.permute.xlu0 3
    %109 = vperm.xlu0 %108, %v47
    %v110 = vpop.permute.xlu0 %109
    %v112 = vlaneseq
    %v113 = vshrl.u32 %v112, 7
    %v114 = vsub.s32 3, %v113
    %v115 = vrot.slane %v48, %v114
    %v116 = vlaneseq
    %v117 = vshrl.u32 %v116, 7
    %v118 = vsub.s32 3, %v117
    %v119 = vrot.slane %v49, %v118
    %v120 = vmin.f32 %v106, %v115
    %v121 = vmin.f32 %v106, %v119
    %v122 = vmin.f32 %v110, %v115
    %v123 = vmin.f32 %v110, %v119
    %124 = vset.pattern.permute.xlu0 1
    %125 = vperm.xlu0 %124, %v46
    %v126 = vpop.permute.xlu0 %125
    %128 = vset.pattern.permute.xlu0 1
    %129 = vperm.xlu0 %128, %v47
    %v130 = vpop.permute.xlu0 %129
    %v132 = vlaneseq
    %v133 = vshrl.u32 %v132, 7
    %v134 = vsub.s32 1, %v133
    %v135 = vrot.slane %v48, %v134
    %v136 = vlaneseq
    %v137 = vshrl.u32 %v136, 7
    %v138 = vsub.s32 1, %v137
    %v139 = vrot.slane %v49, %v138
    %v140 = vmax.f32 %v126, %v135
    %v141 = vmax.f32 %v126, %v139
    %v142 = vmax.f32 %v130, %v135
    %v143 = vmax.f32 %v130, %v139
    %v144 = vsub.f32 %v120, %v140
    %v145 = vsub.f32 %v121, %v141
    %v146 = vsub.f32 %v122, %v142
    %v147 = vsub.f32 %v123, %v143
    %v148 = vmax.f32 %v144, 0.0
    %v149 = vmax.f32 %v145, 0.0
    %v150 = vmax.f32 %v146, 0.0
    %v151 = vmax.f32 %v147, 0.0
    %v152 = vmul.f32 %v100, %v148
    %v153 = vmul.f32 %v101, %v149
    %v154 = vmul.f32 %v102, %v150
    %v155 = vmul.f32 %v103, %v151
    %156 = vrot.lane.b32.xlu0 %v46, 2
    %v157 = vpop.permute.xlu0 %156
    %158 = vrot.lane.b32.xlu0 %v47, 2
    %v159 = vpop.permute.xlu0 %158
    %v162 = vsub.f32 %v46, %v157
    %v163 = vsub.f32 %v47, %v159
    %166 = vrot.lane.b32.xlu0 %v162, 127
    %v167 = vpop.permute.xlu0 %166
    %168 = vrot.lane.b32.xlu0 %v163, 127
    %v169 = vpop.permute.xlu0 %168
    %v172 = vmul.f32 %v162, %v167
    %v173 = vmul.f32 %v163, %v169
    %v176 = vrot.slane %v48, 6
    %v177 = vrot.slane %v49, 6
    %v180 = vsub.f32 %v48, %v176
    %v181 = vsub.f32 %v49, %v177
    %v184 = vrot.slane %v180, 1
    %v185 = vrot.slane %v181, 1
    %v188 = vmul.f32 %v180, %v184
    %v189 = vmul.f32 %v181, %v185
    %191 = vset.pattern.permute.xlu0 2
    %192 = vperm.xlu0 %191, %v172
    %v193 = vpop.permute.xlu0 %192
    %196 = vset.pattern.permute.xlu0 2
    %197 = vperm.xlu0 %196, %v173
    %v198 = vpop.permute.xlu0 %197
    %v200 = vlaneseq
    %v201 = vshrl.u32 %v200, 7
    %v202 = vsub.s32 2, %v201
    %v203 = vrot.slane %v188, %v202
    %v204 = vlaneseq
    %v205 = vshrl.u32 %v204, 7
    %v206 = vsub.s32 2, %v205
    %v207 = vrot.slane %v189, %v206
    %v208 = vadd.f32 %v193, %v203
    %v209 = vadd.f32 %v193, %v207
    %v210 = vadd.f32 %v198, %v203
    %v211 = vadd.f32 %v198, %v207
    %v212 = vsub.f32 %v208, %v152
    %v213 = vsub.f32 %v209, %v153
    %v214 = vsub.f32 %v210, %v154
    %v215 = vsub.f32 %v211, %v155
    %v216 = vrcp.pop %v212
    %v217 = vmul.f32 %v152, %v216
    %v218 = vrcp.pop %v213
    %v219 = vmul.f32 %v153, %v218
    %v220 = vrcp.pop %v214
    %v221 = vmul.f32 %v154, %v220
    %v222 = vrcp.pop %v215
    %v223 = vmul.f32 %v155, %v222
    %v224 = vsel %vm52, 1, 0
    %v225 = vsel %vm53, 1, 0
    %226 = vset.pattern.permute.xlu0 4
    %227 = vperm.xlu0 %226, %v224
    %v228 = vpop.permute.xlu0 %227
    %229 = vset.pattern.permute.xlu0 4
    %230 = vperm.xlu0 %229, %v225
    %v231 = vpop.permute.xlu0 %230
    %vm232 = vcmp.eq.s32.totalorder %v228, 1
    %vm233 = vcmp.eq.s32.totalorder %v231, 1
    %v234 = vsel %vm232, %v217, -1.0
    %v235 = vsel %vm232, %v219, -1.0
    %v236 = vsel %vm233, %v221, -1.0
    %v237 = vsel %vm233, %v223, -1.0
    %v238 = vlaneseq
    %v239 = vshrl.u32 %v238, 7
    %v240 = vlaneseq
    %v241 = vand.u32 %v240, 127
    %v242 = vadd.s32 %v241, 128
    %vm243 = vcmask 1042432
    %v244 = vsel %vm243, %v234, -inf
    %v245 = vrot.slane %v244, 4
    %v246 = vmax.f32 %v244, %v245
    %v247 = vrot.slane %v246, 2
    %v248 = vmax.f32 %v246, %v247
    %v249 = vrot.slane %v248, 1
    %v250 = vmax.f32 %v248, %v249
    %v251 = vsel %vm243, %v235, -inf
    %v252 = vrot.slane %v251, 4
    %v253 = vmax.f32 %v251, %v252
    %v254 = vrot.slane %v253, 2
    %v255 = vmax.f32 %v253, %v254
    %v256 = vrot.slane %v255, 1
    %v257 = vmax.f32 %v255, %v256
    %v258 = vsel %vm243, %v236, -inf
    %v259 = vrot.slane %v258, 4
    %v260 = vmax.f32 %v258, %v259
    %v261 = vrot.slane %v260, 2
    %v262 = vmax.f32 %v260, %v261
    %v263 = vrot.slane %v262, 1
    %v264 = vmax.f32 %v262, %v263
    %v265 = vsel %vm243, %v237, -inf
    %v266 = vrot.slane %v265, 4
    %v267 = vmax.f32 %v265, %v266
    %v268 = vrot.slane %v267, 2
    %v269 = vmax.f32 %v267, %v268
    %v270 = vrot.slane %v269, 1
    %v271 = vmax.f32 %v269, %v270
    %vm272 = vcmp.eq.f32.partialorder %v234, %v250
    %vm273 = vcmp.eq.f32.partialorder %v235, %v257
    %vm274 = vcmp.eq.f32.partialorder %v236, %v264
    %vm275 = vcmp.eq.f32.partialorder %v237, %v271
    %v276 = vsel %vm272, %v239, 3
    %v277 = vsel %vm273, %v239, 3
    %v278 = vsel %vm274, %v239, 3
    %v279 = vsel %vm275, %v239, 3
    %v280 = vsel %vm243, %v276, 2147483647
    %v281 = vrot.slane %v280, 4
    %vm282 = vcmp.lt.s32.totalorder %v280, %v281
    %v283 = vsel %vm282, %v280, %v281
    %v284 = vrot.slane %v283, 2
    %vm285 = vcmp.lt.s32.totalorder %v283, %v284
    %v286 = vsel %vm285, %v283, %v284
    %v287 = vrot.slane %v286, 1
    %vm288 = vcmp.lt.s32.totalorder %v286, %v287
    %v289 = vsel %vm288, %v286, %v287
    %v290 = vsel %vm243, %v277, 2147483647
    %v291 = vrot.slane %v290, 4
    %vm292 = vcmp.lt.s32.totalorder %v290, %v291
    %v293 = vsel %vm292, %v290, %v291
    %v294 = vrot.slane %v293, 2
    %vm295 = vcmp.lt.s32.totalorder %v293, %v294
    %v296 = vsel %vm295, %v293, %v294
    %v297 = vrot.slane %v296, 1
    %vm298 = vcmp.lt.s32.totalorder %v296, %v297
    %v299 = vsel %vm298, %v296, %v297
    %v300 = vsel %vm243, %v278, 2147483647
    %v301 = vrot.slane %v300, 4
    %vm302 = vcmp.lt.s32.totalorder %v300, %v301
    %v303 = vsel %vm302, %v300, %v301
    %v304 = vrot.slane %v303, 2
    %vm305 = vcmp.lt.s32.totalorder %v303, %v304
    %v306 = vsel %vm305, %v303, %v304
    %v307 = vrot.slane %v306, 1
    %vm308 = vcmp.lt.s32.totalorder %v306, %v307
    %v309 = vsel %vm308, %v306, %v307
    %v310 = vsel %vm243, %v279, 2147483647
    %v311 = vrot.slane %v310, 4
    %vm312 = vcmp.lt.s32.totalorder %v310, %v311
    %v313 = vsel %vm312, %v310, %v311
    %v314 = vrot.slane %v313, 2
    %vm315 = vcmp.lt.s32.totalorder %v313, %v314
    %v316 = vsel %vm315, %v313, %v314
    %v317 = vrot.slane %v316, 1
    %vm318 = vcmp.lt.s32.totalorder %v316, %v317
    %v319 = vsel %vm318, %v316, %v317
    %v320 = vmax.f32 %v244, %v251
    %321 = vmax.xlane.f32.xlu0 %v320
    %v322 = vpop.xlane.xlu0 %321
    %v323 = vmax.f32 %v258, %v265
    %324 = vmax.xlane.f32.xlu0 %v323
    %v325 = vpop.xlane.xlu0 %324
    %vm326 = vcmp.eq.f32.partialorder %v234, %v322
    %vm327 = vcmp.eq.f32.partialorder %v235, %v322
    %vm328 = vcmp.eq.f32.partialorder %v236, %v325
    %vm329 = vcmp.eq.f32.partialorder %v237, %v325
    %v330 = vsel %vm326, %v241, 256
    %v331 = vsel %vm327, %v242, 256
    %v332 = vsel %vm328, %v241, 256
    %v333 = vsel %vm329, %v242, 256
    %v334 = vsel %vm243, %v330, 2147483647
    %v335 = vsel %vm243, %v331, 2147483647
    %vm336 = vcmp.lt.s32.totalorder %v334, %v335
    %v337 = vsel %vm336, %v334, %v335
    %v338 = vand.u32 %v337, 65535
    %v339 = vshra.s32 %v337, 16
    %v340 = vcvt.s32.f32 %v338
    %v341 = vcvt.s32.f32 %v339
    %342 = vmin.xlane.f32.xlu0 %v341
    %v343 = vpop.xlane.xlu0 %342
    %vm344 = vcmp.eq.f32.partialorder %v341, %v343
    %v345 = vsel %vm344, %v340, inf
    %346 = vmin.xlane.f32.xlu0 %v345
    %v347 = vpop.xlane.xlu0 %346
    %v348 = vcvt.f32.s32 %v347
    %v349 = vcvt.f32.s32 %v343
    %v350 = vshll.u32 %v349, 16
    %v351 = vadd.s32 %v350, %v348
    %v352 = vsel %vm243, %v332, 2147483647
    %v353 = vsel %vm243, %v333, 2147483647
    %vm354 = vcmp.lt.s32.totalorder %v352, %v353
    %v355 = vsel %vm354, %v352, %v353
    %v356 = vand.u32 %v355, 65535
    %v357 = vshra.s32 %v355, 16
    %v358 = vcvt.s32.f32 %v356
    %v359 = vcvt.s32.f32 %v357
    %360 = vmin.xlane.f32.xlu0 %v359
    %v361 = vpop.xlane.xlu0 %360
    %vm362 = vcmp.eq.f32.partialorder %v359, %v361
    %v363 = vsel %vm362, %v358, inf
    %364 = vmin.xlane.f32.xlu0 %v363
    %v365 = vpop.xlane.xlu0 %364
    %v366 = vcvt.f32.s32 %v365
    %v367 = vcvt.f32.s32 %v361
    %v368 = vshll.u32 %v367, 16
    %v369 = vadd.s32 %v368, %v366
    %v370 = vsel %vm52, %v351, 256
    %v371 = vsel %vm53, %v369, 256
    %372 = vset.pattern.permute.xlu0 4
    %373 = vperm.xlu0 %372, %v370
    %v374 = vpop.permute.xlu0 %373
    %375 = vset.pattern.permute.xlu0 4
    %376 = vperm.xlu0 %375, %v371
    %v377 = vpop.permute.xlu0 %376
    %vm378 = vcmp.eq.s32.totalorder %v241, %v374
    %vm379 = vcmp.eq.s32.totalorder %v242, %v374
    %vm380 = vcmp.eq.s32.totalorder %v241, %v377
    %vm381 = vcmp.eq.s32.totalorder %v242, %v377
    %v382 = vsel %vm378, %v239, 4294967295
    %v383 = vsel %vm379, %v239, 4294967295
    %v384 = vsel %vm380, %v239, 4294967295
    %v385 = vsel %vm381, %v239, 4294967295
    %v386 = vsel %vm243, %v382, 2147483648
    %v387 = vrot.slane %v386, 4
    %vm388 = vcmp.gt.s32.totalorder %v386, %v387
    %v389 = vsel %vm388, %v386, %v387
    %v390 = vrot.slane %v389, 2
    %vm391 = vcmp.gt.s32.totalorder %v389, %v390
    %v392 = vsel %vm391, %v389, %v390
    %v393 = vrot.slane %v392, 1
    %vm394 = vcmp.gt.s32.totalorder %v392, %v393
    %v395 = vsel %vm394, %v392, %v393
    %v396 = vsel %vm243, %v383, 2147483648
    %v397 = vrot.slane %v396, 4
    %vm398 = vcmp.gt.s32.totalorder %v396, %v397
    %v399 = vsel %vm398, %v396, %v397
    %v400 = vrot.slane %v399, 2
    %vm401 = vcmp.gt.s32.totalorder %v399, %v400
    %v402 = vsel %vm401, %v399, %v400
    %v403 = vrot.slane %v402, 1
    %vm404 = vcmp.gt.s32.totalorder %v402, %v403
    %v405 = vsel %vm404, %v402, %v403
    %v406 = vsel %vm243, %v384, 2147483648
    %v407 = vrot.slane %v406, 4
    %vm408 = vcmp.gt.s32.totalorder %v406, %v407
    %v409 = vsel %vm408, %v406, %v407
    %v410 = vrot.slane %v409, 2
    %vm411 = vcmp.gt.s32.totalorder %v409, %v410
    %v412 = vsel %vm411, %v409, %v410
    %v413 = vrot.slane %v412, 1
    %vm414 = vcmp.gt.s32.totalorder %v412, %v413
    %v415 = vsel %vm414, %v412, %v413
    %v416 = vsel %vm243, %v385, 2147483648
    %v417 = vrot.slane %v416, 4
    %vm418 = vcmp.gt.s32.totalorder %v416, %v417
    %v419 = vsel %vm418, %v416, %v417
    %v420 = vrot.slane %v419, 2
    %vm421 = vcmp.gt.s32.totalorder %v419, %v420
    %v422 = vsel %vm421, %v419, %v420
    %v423 = vrot.slane %v422, 1
    %vm424 = vcmp.gt.s32.totalorder %v422, %v423
    %v425 = vsel %vm424, %v422, %v423
    %vm426 = vcmp.ge.s32.totalorder %v395, 0
    %vm427 = vcmp.ge.s32.totalorder %v405, 0
    %vm428 = vcmp.ge.s32.totalorder %v415, 0
    %vm429 = vcmp.ge.s32.totalorder %v425, 0
    %v430 = vsel %vm426, %v395, %v289
    %v431 = vsel %vm427, %v405, %v299
    %v432 = vsel %vm428, %v415, %v309
    %v433 = vsel %vm429, %v425, %v319
    %v434 = vsel %vm426, 1.0, %v250
    %v435 = vsel %vm427, 1.0, %v257
    %v436 = vsel %vm428, 1.0, %v264
    %v437 = vsel %vm429, 1.0, %v271
    %vm438 = vcmp.eq.s32.totalorder %v239, %v430
    %vm439 = vcmp.eq.s32.totalorder %v239, %v431
    %vm440 = vcmp.eq.s32.totalorder %v239, %v432
    %vm441 = vcmp.eq.s32.totalorder %v239, %v433
    %v442 = vsel %vm438, 1, 0
    %v443 = vsel %vm439, 1, 0
    %v444 = vsel %vm440, 1, 0
    %v445 = vsel %vm441, 1, 0
    %v446 = vcvt.s32.f32 %v442
    %v447 = vcvt.s32.f32 %v443
    %v448 = vcvt.s32.f32 %v444
    %v449 = vcvt.s32.f32 %v445
    %v450 = vmul.f32 %v78, %v446
    %v451 = vmul.f32 %v78, %v447
    %v452 = vmul.f32 %v82, %v448
    %v453 = vmul.f32 %v82, %v449
    %v454 = vsel %vm243, %v450, 0.0
    %v455 = vrot.slane %v454, 4
    %v456 = vadd.f32 %v454, %v455
    %v457 = vrot.slane %v456, 2
    %v458 = vadd.f32 %v456, %v457
    %v459 = vrot.slane %v458, 1
    %v460 = vadd.f32 %v458, %v459
    %v461 = vsel %vm243, %v451, 0.0
    %v462 = vrot.slane %v461, 4
    %v463 = vadd.f32 %v461, %v462
    %v464 = vrot.slane %v463, 2
    %v465 = vadd.f32 %v463, %v464
    %v466 = vrot.slane %v465, 1
    %v467 = vadd.f32 %v465, %v466
    %v468 = vsel %vm243, %v452, 0.0
    %v469 = vrot.slane %v468, 4
    %v470 = vadd.f32 %v468, %v469
    %v471 = vrot.slane %v470, 2
    %v472 = vadd.f32 %v470, %v471
    %v473 = vrot.slane %v472, 1
    %v474 = vadd.f32 %v472, %v473
    %v475 = vsel %vm243, %v453, 0.0
    %v476 = vrot.slane %v475, 4
    %v477 = vadd.f32 %v475, %v476
    %v478 = vrot.slane %v477, 2
    %v479 = vadd.f32 %v477, %v478
    %v480 = vrot.slane %v479, 1
    %v481 = vadd.f32 %v479, %v480
    %v482 = vmul.f32 %v126, %v446
    %v483 = vmul.f32 %v126, %v447
    %v484 = vmul.f32 %v130, %v448
    %v485 = vmul.f32 %v130, %v449
    %v486 = vsel %vm243, %v482, 0.0
    %v487 = vrot.slane %v486, 4
    %v488 = vadd.f32 %v486, %v487
    %v489 = vrot.slane %v488, 2
    %v490 = vadd.f32 %v488, %v489
    %v491 = vrot.slane %v490, 1
    %v492 = vadd.f32 %v490, %v491
    %v493 = vsel %vm243, %v483, 0.0
    %v494 = vrot.slane %v493, 4
    %v495 = vadd.f32 %v493, %v494
    %v496 = vrot.slane %v495, 2
    %v497 = vadd.f32 %v495, %v496
    %v498 = vrot.slane %v497, 1
    %v499 = vadd.f32 %v497, %v498
    %v500 = vsel %vm243, %v484, 0.0
    %v501 = vrot.slane %v500, 4
    %v502 = vadd.f32 %v500, %v501
    %v503 = vrot.slane %v502, 2
    %v504 = vadd.f32 %v502, %v503
    %v505 = vrot.slane %v504, 1
    %v506 = vadd.f32 %v504, %v505
    %v507 = vsel %vm243, %v485, 0.0
    %v508 = vrot.slane %v507, 4
    %v509 = vadd.f32 %v507, %v508
    %v510 = vrot.slane %v509, 2
    %v511 = vadd.f32 %v509, %v510
    %v512 = vrot.slane %v511, 1
    %v513 = vadd.f32 %v511, %v512
    %v514 = vmul.f32 %v57, %v446
    %v515 = vmul.f32 %v57, %v447
    %v516 = vmul.f32 %v62, %v448
    %v517 = vmul.f32 %v62, %v449
    %v518 = vsel %vm243, %v514, 0.0
    %v519 = vrot.slane %v518, 4
    %v520 = vadd.f32 %v518, %v519
    %v521 = vrot.slane %v520, 2
    %v522 = vadd.f32 %v520, %v521
    %v523 = vrot.slane %v522, 1
    %v524 = vadd.f32 %v522, %v523
    %v525 = vsel %vm243, %v515, 0.0
    %v526 = vrot.slane %v525, 4
    %v527 = vadd.f32 %v525, %v526
    %v528 = vrot.slane %v527, 2
    %v529 = vadd.f32 %v527, %v528
    %v530 = vrot.slane %v529, 1
    %v531 = vadd.f32 %v529, %v530
    %v532 = vsel %vm243, %v516, 0.0
    %v533 = vrot.slane %v532, 4
    %v534 = vadd.f32 %v532, %v533
    %v535 = vrot.slane %v534, 2
    %v536 = vadd.f32 %v534, %v535
    %v537 = vrot.slane %v536, 1
    %v538 = vadd.f32 %v536, %v537
    %v539 = vsel %vm243, %v517, 0.0
    %v540 = vrot.slane %v539, 4
    %v541 = vadd.f32 %v539, %v540
    %v542 = vrot.slane %v541, 2
    %v543 = vadd.f32 %v541, %v542
    %v544 = vrot.slane %v543, 1
    %v545 = vadd.f32 %v543, %v544
    %v546 = vmul.f32 %v106, %v446
    %v547 = vmul.f32 %v106, %v447
    %v548 = vmul.f32 %v110, %v448
    %v549 = vmul.f32 %v110, %v449
    %v550 = vsel %vm243, %v546, 0.0
    %v551 = vrot.slane %v550, 4
    %v552 = vadd.f32 %v550, %v551
    %v553 = vrot.slane %v552, 2
    %v554 = vadd.f32 %v552, %v553
    %v555 = vrot.slane %v554, 1
    %v556 = vadd.f32 %v554, %v555
    %v557 = vsel %vm243, %v547, 0.0
    %v558 = vrot.slane %v557, 4
    %v559 = vadd.f32 %v557, %v558
    %v560 = vrot.slane %v559, 2
    %v561 = vadd.f32 %v559, %v560
    %v562 = vrot.slane %v561, 1
    %v563 = vadd.f32 %v561, %v562
    %v564 = vsel %vm243, %v548, 0.0
    %v565 = vrot.slane %v564, 4
    %v566 = vadd.f32 %v564, %v565
    %v567 = vrot.slane %v566, 2
    %v568 = vadd.f32 %v566, %v567
    %v569 = vrot.slane %v568, 1
    %v570 = vadd.f32 %v568, %v569
    %v571 = vsel %vm243, %v549, 0.0
    %v572 = vrot.slane %v571, 4
    %v573 = vadd.f32 %v571, %v572
    %v574 = vrot.slane %v573, 2
    %v575 = vadd.f32 %v573, %v574
    %v576 = vrot.slane %v575, 1
    %v577 = vadd.f32 %v575, %v576
    %578 = vset.pattern.permute.xlu0 4
    %579 = vperm.xlu0 %578, %v46
    %v580 = vpop.permute.xlu0 %579
    %582 = vset.pattern.permute.xlu0 4
    %583 = vperm.xlu0 %582, %v47
    %v584 = vpop.permute.xlu0 %583
    %v586 = vmul.f32 %v580, %v446
    %v587 = vmul.f32 %v580, %v447
    %v588 = vmul.f32 %v584, %v448
    %v589 = vmul.f32 %v584, %v449
    %v590 = vsel %vm243, %v586, 0.0
    %v591 = vrot.slane %v590, 4
    %v592 = vadd.f32 %v590, %v591
    %v593 = vrot.slane %v592, 2
    %v594 = vadd.f32 %v592, %v593
    %v595 = vrot.slane %v594, 1
    %v596 = vadd.f32 %v594, %v595
    %v597 = vsel %vm243, %v587, 0.0
    %v598 = vrot.slane %v597, 4
    %v599 = vadd.f32 %v597, %v598
    %v600 = vrot.slane %v599, 2
    %v601 = vadd.f32 %v599, %v600
    %v602 = vrot.slane %v601, 1
    %v603 = vadd.f32 %v601, %v602
    %v604 = vsel %vm243, %v588, 0.0
    %v605 = vrot.slane %v604, 4
    %v606 = vadd.f32 %v604, %v605
    %v607 = vrot.slane %v606, 2
    %v608 = vadd.f32 %v606, %v607
    %v609 = vrot.slane %v608, 1
    %v610 = vadd.f32 %v608, %v609
    %v611 = vsel %vm243, %v589, 0.0
    %v612 = vrot.slane %v611, 4
    %v613 = vadd.f32 %v611, %v612
    %v614 = vrot.slane %v613, 2
    %v615 = vadd.f32 %v613, %v614
    %v616 = vrot.slane %v615, 1
    %v617 = vadd.f32 %v615, %v616
    %v618 = vcvt.f32.s32.to.zero.pseudo %v596
    %v619 = vcvt.f32.s32.to.zero.pseudo %v603
    %v620 = vcvt.f32.s32.to.zero.pseudo %v610
    %v621 = vcvt.f32.s32.to.zero.pseudo %v617
    %vm622 = vcmp.lt.f32.partialorder %v434, 0.5
    %vm623 = vcmp.lt.f32.partialorder %v435, 0.5
    %vm624 = vcmp.lt.f32.partialorder %v436, 0.5
    %vm625 = vcmp.lt.f32.partialorder %v437, 0.5
    %v626 = vsel %vm622, 0, %v618
    %v627 = vsel %vm623, 0, %v619
    %v628 = vsel %vm624, 0, %v620
    %v629 = vsel %vm625, 0, %v621
    %v630 = vadd.f32 %v460, %v524
    %v631 = vadd.f32 %v467, %v531
    %v632 = vadd.f32 %v474, %v538
    %v633 = vadd.f32 %v481, %v545
    %v634 = vmul.f32 %v630, 0.5
    %v635 = vmul.f32 %v631, 0.5
    %v636 = vmul.f32 %v632, 0.5
    %v637 = vmul.f32 %v633, 0.5
    %v638 = vadd.f32 %v492, %v556
    %v639 = vadd.f32 %v499, %v563
    %v640 = vadd.f32 %v506, %v570
    %v641 = vadd.f32 %v513, %v577
    %v642 = vmul.f32 %v638, 0.5
    %v643 = vmul.f32 %v639, 0.5
    %v644 = vmul.f32 %v640, 0.5
    %v645 = vmul.f32 %v641, 0.5
    %v646 = vsub.f32 %v524, %v460
    %v647 = vsub.f32 %v531, %v467
    %v648 = vsub.f32 %v538, %v474
    %v649 = vsub.f32 %v545, %v481
    %v650 = vmax.f32 %v646, 1e-08
    %v651 = vmax.f32 %v647, 1e-08
    %v652 = vmax.f32 %v648, 1e-08
    %v653 = vmax.f32 %v649, 1e-08
    %v654 = vsub.f32 %v556, %v492
    %v655 = vsub.f32 %v563, %v499
    %v656 = vsub.f32 %v570, %v506
    %v657 = vsub.f32 %v577, %v513
    %v658 = vmax.f32 %v654, 1e-08
    %v659 = vmax.f32 %v655, 1e-08
    %v660 = vmax.f32 %v656, 1e-08
    %v661 = vmax.f32 %v657, 1e-08
    %v662 = vlaneseq
    %v663 = vshrl.u32 %v662, 7
    %v664 = vsub.s32 4, %v663
    %v665 = vrot.slane %v48, %v664
    %v666 = vlaneseq
    %v667 = vshrl.u32 %v666, 7
    %v668 = vsub.s32 4, %v667
    %v669 = vrot.slane %v49, %v668
    %v670 = vsub.f32 %v634, %v665
    %v671 = vsub.f32 %v635, %v669
    %v672 = vsub.f32 %v636, %v665
    %v673 = vsub.f32 %v637, %v669
    %v674 = vlaneseq
    %v675 = vshrl.u32 %v674, 7
    %v676 = vsub.s32 6, %v675
    %v677 = vrot.slane %v48, %v676
    %v678 = vlaneseq
    %v679 = vshrl.u32 %v678, 7
    %v680 = vsub.s32 6, %v679
    %v681 = vrot.slane %v49, %v680
    %v682 = vmul.f32 %v670, %v677
    %v683 = vmul.f32 %v671, %v681
    %v684 = vmul.f32 %v672, %v677
    %v685 = vmul.f32 %v673, %v681
    %v686 = vlaneseq
    %v687 = vshrl.u32 %v686, 7
    %v688 = vsub.s32 5, %v687
    %v689 = vrot.slane %v48, %v688
    %v690 = vlaneseq
    %v691 = vshrl.u32 %v690, 7
    %v692 = vsub.s32 5, %v691
    %v693 = vrot.slane %v49, %v692
    %v694 = vsub.f32 %v642, %v689
    %v695 = vsub.f32 %v643, %v693
    %v696 = vsub.f32 %v644, %v689
    %v697 = vsub.f32 %v645, %v693
    %v698 = vlaneseq
    %v699 = vshrl.u32 %v698, 7
    %v700 = vsub.s32 7, %v699
    %v701 = vrot.slane %v48, %v700
    %v702 = vlaneseq
    %v703 = vshrl.u32 %v702, 7
    %v704 = vsub.s32 7, %v703
    %v705 = vrot.slane %v49, %v704
    %v706 = vmul.f32 %v694, %v701
    %v707 = vmul.f32 %v695, %v705
    %v708 = vmul.f32 %v696, %v701
    %v709 = vmul.f32 %v697, %v705
    %v710 = vlog2.pop %v650
    %v711 = vmul.f32 %v710, 0.6931472
    %v712 = vlog2.pop %v651
    %v713 = vmul.f32 %v712, 0.6931472
    %v714 = vlog2.pop %v652
    %v715 = vmul.f32 %v714, 0.6931472
    %v716 = vlog2.pop %v653
    %v717 = vmul.f32 %v716, 0.6931472
    %v718 = vlaneseq
    %v719 = vshrl.u32 %v718, 7
    %v720 = vsub.s32 0, %v719
    %v721 = vrot.slane %v50, %v720
    %v722 = vlaneseq
    %v723 = vshrl.u32 %v722, 7
    %v724 = vsub.s32 0, %v723
    %v725 = vrot.slane %v51, %v724
    %v726 = vsub.f32 %v711, %v721
    %v727 = vsub.f32 %v713, %v725
    %v728 = vsub.f32 %v715, %v721
    %v729 = vsub.f32 %v717, %v725
    %v730 = vmul.f32 %v726, 5.0
    %v731 = vmul.f32 %v727, 5.0
    %v732 = vmul.f32 %v728, 5.0
    %v733 = vmul.f32 %v729, 5.0
    %v734 = vlog2.pop %v658
    %v735 = vmul.f32 %v734, 0.6931472
    %v736 = vlog2.pop %v659
    %v737 = vmul.f32 %v736, 0.6931472
    %v738 = vlog2.pop %v660
    %v739 = vmul.f32 %v738, 0.6931472
    %v740 = vlog2.pop %v661
    %v741 = vmul.f32 %v740, 0.6931472
    %v742 = vlaneseq
    %v743 = vshrl.u32 %v742, 7
    %v744 = vsub.s32 1, %v743
    %v745 = vrot.slane %v50, %v744
    %v746 = vlaneseq
    %v747 = vshrl.u32 %v746, 7
    %v748 = vsub.s32 1, %v747
    %v749 = vrot.slane %v51, %v748
    %v750 = vsub.f32 %v735, %v745
    %v751 = vsub.f32 %v737, %v749
    %v752 = vsub.f32 %v739, %v745
    %v753 = vsub.f32 %v741, %v749
    %v754 = vmul.f32 %v750, 5.0
    %v755 = vmul.f32 %v751, 5.0
    %v756 = vmul.f32 %v752, 5.0
    %v757 = vmul.f32 %v753, 5.0
    %v758 = vld [vmem:[%s2] sm:$0xff]
    %v759 = vld [vmem:[%s2 + $0x8] sm:$0xff]
    %v764 = vcombine.low %v682, %v683
    %v765 = vcombine.low %v684, %v685
    %v768 = vsub.f32 %v758, %v764
    %v769 = vsub.f32 %v759, %v765
    %v770 = vand.u32 2147483647, %v768
    %v771 = vand.u32 2147483647, %v769
    %v776 = vcombine.low %v706, %v707
    %v777 = vcombine.low %v708, %v709
    %v778 = vrot.slane %v776, 7
    %v779 = vrot.slane %v777, 7
    %v782 = vsub.f32 %v758, %v778
    %v783 = vsub.f32 %v759, %v779
    %v784 = vand.u32 2147483647, %v782
    %v785 = vand.u32 2147483647, %v783
    %v788 = vrot.slane %v784, 5
    %v789 = vrot.slane %v788, 4
    %v790 = vrot.slane %v785, 5
    %v791 = vrot.slane %v790, 4
    %v794 = vadd.f32 %v770, %v789
    %v795 = vadd.f32 %v771, %v791
    %v800 = vcombine.low %v730, %v731
    %v801 = vcombine.low %v732, %v733
    %v802 = vrot.slane %v800, 6
    %v803 = vrot.slane %v801, 6
    %v806 = vsub.f32 %v758, %v802
    %v807 = vsub.f32 %v759, %v803
    %v808 = vand.u32 2147483647, %v806
    %v809 = vand.u32 2147483647, %v807
    %v812 = vrot.slane %v808, 6
    %v813 = vrot.slane %v812, 4
    %v814 = vrot.slane %v809, 6
    %v815 = vrot.slane %v814, 4
    %v818 = vadd.f32 %v794, %v813
    %v819 = vadd.f32 %v795, %v815
    %v824 = vcombine.low %v754, %v755
    %v825 = vcombine.low %v756, %v757
    %v826 = vrot.slane %v824, 5
    %v827 = vrot.slane %v825, 5
    %v830 = vsub.f32 %v758, %v826
    %v831 = vsub.f32 %v759, %v827
    %v832 = vand.u32 2147483647, %v830
    %v833 = vand.u32 2147483647, %v831
    %v836 = vrot.slane %v832, 7
    %v837 = vrot.slane %v836, 4
    %v838 = vrot.slane %v833, 7
    %v839 = vrot.slane %v838, 4
    %v842 = vadd.f32 %v818, %v837
    %v843 = vadd.f32 %v819, %v839
    %v844 = vld [vmem:[#allocation5] sm:$0xff]
    %v845 = vld [vmem:[#allocation5 + $0x8] sm:$0xff]
    %v846 = vld [vmem:[#allocation5 + $0x10] sm:$0xff]
    %v847 = vld [vmem:[#allocation5 + $0x18] sm:$0xff]
    %v848 = vrot.slane %v844, 4
    %v849 = vmax.f32 %v844, %v848
    %v850 = vrot.slane %v849, 2
    %v851 = vmax.f32 %v849, %v850
    %v852 = vrot.slane %v851, 1
    %v853 = vmax.f32 %v851, %v852
    %v854 = vrot.slane %v845, 4
    %v855 = vmax.f32 %v845, %v854
    %v856 = vrot.slane %v855, 2
    %v857 = vmax.f32 %v855, %v856
    %v858 = vrot.slane %v857, 1
    %v859 = vmax.f32 %v857, %v858
    %v860 = vrot.slane %v846, 4
    %v861 = vmax.f32 %v846, %v860
    %v862 = vrot.slane %v861, 2
    %v863 = vmax.f32 %v861, %v862
    %v864 = vrot.slane %v863, 1
    %v865 = vmax.f32 %v863, %v864
    %v866 = vrot.slane %v847, 4
    %v867 = vmax.f32 %v847, %v866
    %v868 = vrot.slane %v867, 2
    %v869 = vmax.f32 %v867, %v868
    %v870 = vrot.slane %v869, 1
    %v871 = vmax.f32 %v869, %v870
    %v872 = vsub.f32 %v844, %v853
    %v873 = vsub.f32 %v845, %v859
    %v874 = vsub.f32 %v846, %v865
    %v875 = vsub.f32 %v847, %v871
    %v876 = vmul.f32 %v872, 1.442695
    %v877 = vpow.pop %v876
    %v878 = vmul.f32 %v873, 1.442695
    %v879 = vpow.pop %v878
    %v880 = vmul.f32 %v874, 1.442695
    %v881 = vpow.pop %v880
    %v882 = vmul.f32 %v875, 1.442695
    %v883 = vpow.pop %v882
    %v884 = vrot.slane %v877, 4
    %v885 = vadd.f32 %v877, %v884
    %v886 = vrot.slane %v885, 2
    %v887 = vadd.f32 %v885, %v886
    %v888 = vrot.slane %v887, 1
    %v889 = vadd.f32 %v887, %v888
    %v890 = vrot.slane %v879, 4
    %v891 = vadd.f32 %v879, %v890
    %v892 = vrot.slane %v891, 2
    %v893 = vadd.f32 %v891, %v892
    %v894 = vrot.slane %v893, 1
    %v895 = vadd.f32 %v893, %v894
    %v896 = vrot.slane %v881, 4
    %v897 = vadd.f32 %v881, %v896
    %v898 = vrot.slane %v897, 2
    %v899 = vadd.f32 %v897, %v898
    %v900 = vrot.slane %v899, 1
    %v901 = vadd.f32 %v899, %v900
    %v902 = vrot.slane %v883, 4
    %v903 = vadd.f32 %v883, %v902
    %v904 = vrot.slane %v903, 2
    %v905 = vadd.f32 %v903, %v904
    %v906 = vrot.slane %v905, 1
    %v907 = vadd.f32 %v905, %v906
    %v908 = vlog2.pop %v889
    %v909 = vmul.f32 %v908, 0.6931472
    %v910 = vlog2.pop %v895
    %v911 = vmul.f32 %v910, 0.6931472
    %v912 = vlog2.pop %v901
    %v913 = vmul.f32 %v912, 0.6931472
    %v914 = vlog2.pop %v907
    %v915 = vmul.f32 %v914, 0.6931472
    %v916 = vadd.f32 %v853, %v909
    %v917 = vadd.f32 %v859, %v911
    %v918 = vadd.f32 %v865, %v913
    %v919 = vadd.f32 %v871, %v915
    %vm920 = vcmp.eq.s32.totalorder %v239, %v626
    %vm921 = vcmp.eq.s32.totalorder %v239, %v627
    %vm922 = vcmp.eq.s32.totalorder %v239, %v628
    %vm923 = vcmp.eq.s32.totalorder %v239, %v629
    %v924 = vsel %vm920, %v844, 0.0
    %v925 = vsel %vm921, %v845, 0.0
    %v926 = vsel %vm922, %v846, 0.0
    %v927 = vsel %vm923, %v847, 0.0
    %v928 = vrot.slane %v924, 4
    %v929 = vadd.f32 %v924, %v928
    %v930 = vrot.slane %v929, 2
    %v931 = vadd.f32 %v929, %v930
    %v932 = vrot.slane %v931, 1
    %v933 = vadd.f32 %v931, %v932
    %v934 = vrot.slane %v925, 4
    %v935 = vadd.f32 %v925, %v934
    %v936 = vrot.slane %v935, 2
    %v937 = vadd.f32 %v935, %v936
    %v938 = vrot.slane %v937, 1
    %v939 = vadd.f32 %v937, %v938
    %v940 = vrot.slane %v926, 4
    %v941 = vadd.f32 %v926, %v940
    %v942 = vrot.slane %v941, 2
    %v943 = vadd.f32 %v941, %v942
    %v944 = vrot.slane %v943, 1
    %v945 = vadd.f32 %v943, %v944
    %v946 = vrot.slane %v927, 4
    %v947 = vadd.f32 %v927, %v946
    %v948 = vrot.slane %v947, 2
    %v949 = vadd.f32 %v947, %v948
    %v950 = vrot.slane %v949, 1
    %v951 = vadd.f32 %v949, %v950
    %v952 = vsub.f32 %v916, %v933
    %v953 = vsub.f32 %v917, %v939
    %v954 = vsub.f32 %v918, %v945
    %v955 = vsub.f32 %v919, %v951
    %vm956 = vcmp.ne.s32.totalorder %v626, 0
    %vm957 = vcmp.ne.s32.totalorder %v627, 0
    %vm958 = vcmp.ne.s32.totalorder %v628, 0
    %vm959 = vcmp.ne.s32.totalorder %v629, 0
    %v960 = vsel %vm956, 1, 0
    %v961 = vsel %vm957, 1, 0
    %v962 = vsel %vm958, 1, 0
    %v963 = vsel %vm959, 1, 0
    %v964 = vcvt.s32.f32 %v960
    %v965 = vcvt.s32.f32 %v961
    %v966 = vcvt.s32.f32 %v962
    %v967 = vcvt.s32.f32 %v963
    %v968 = vsub.f32 1.0, %v964
    %v969 = vsub.f32 1.0, %v965
    %v970 = vsub.f32 1.0, %v966
    %v971 = vsub.f32 1.0, %v967
    %v972 = vmul.f32 %v952, %v968
    %v973 = vmul.f32 %v953, %v969
    %v974 = vmul.f32 %v954, %v970
    %v975 = vmul.f32 %v955, %v971
    %vm980 = vcmask 1041409
    %v981 = vsel %vm980, %v966, %v964
    %v982 = vsel %vm980, %v967, %v965
    %vm985 = vcmask 1041408
    %v986 = vsel %vm985, %v981, 0.0
    %v987 = vsel %vm985, %v982, 0.0
    %v988 = vadd.f32 %v986, %v987
    %989 = vadd.xlane.f32.xlu0 %v988
    %v990 = vpop.xlane.xlu0 %989
    %v991 = vmul.f32 %v952, %v964
    %v992 = vmul.f32 %v953, %v965
    %v993 = vmul.f32 %v954, %v966
    %v994 = vmul.f32 %v955, %v967
    %v999 = vsel %vm980, %v993, %v991
    %v1000 = vsel %vm980, %v994, %v992
    %v1003 = vsel %vm985, %v999, 0.0
    %v1004 = vsel %vm985, %v1000, 0.0
    %v1005 = vadd.f32 %v1003, %v1004
    %1006 = vadd.xlane.f32.xlu0 %v1005
    %v1007 = vpop.xlane.xlu0 %1006
    %v1008 = vcombine.low %v964, %v965
    %v1009 = vcombine.low %v966, %v967
    %v1012 = vmul.f32 %v842, %v1008
    %v1013 = vmul.f32 %v843, %v1009
    %v1016 = vlaneseq
    %v1017 = vshrl.u32 %v1016, 7
    %v1018 = vsub.s32 0, %v1017
    %v1019 = vrot.slane %v1012, %v1018
    %v1020 = vlaneseq
    %v1021 = vshrl.u32 %v1020, 7
    %v1022 = vsub.s32 4, %v1021
    %v1023 = vrot.slane %v1012, %v1022
    %v1024 = vlaneseq
    %v1025 = vshrl.u32 %v1024, 7
    %v1026 = vsub.s32 0, %v1025
    %v1027 = vrot.slane %v1013, %v1026
    %v1028 = vlaneseq
    %v1029 = vshrl.u32 %v1028, 7
    %v1030 = vsub.s32 4, %v1029
    %v1031 = vrot.slane %v1013, %v1030
    %v1032 = vsel %vm980, %v1027, %v1019
    %v1033 = vsel %vm980, %v1031, %v1023
    %v1036 = vsel %vm985, %v1032, 0.0
    %v1037 = vsel %vm985, %v1033, 0.0
    %v1038 = vadd.f32 %v1036, %v1037
    %1039 = vadd.xlane.f32.xlu0 %v1038
    %v1040 = vpop.xlane.xlu0 %1039
    %v1041 = vmul.f32 %v990, 3.0
    %v1046 = vsel %vm980, %v974, %v972
    %v1047 = vsel %vm980, %v975, %v973
    %v1050 = vsel %vm985, %v1046, -inf
    %v1051 = vsel %vm985, %v1047, -inf
    %v1052 = vmax.f32 %v1050, %v1051
    %1053 = vmax.xlane.f32.xlu0 %v1052
    %v1054 = vpop.xlane.xlu0 %1053
    loop: start=0, step=1, limit=30
    $region26: #{tpu_custom_call.1} parent=1 // loop_pre_header
      _
    $region27: #{tpu_custom_call.1} parent=1 // loop_header
      %s1056 = sphi 0, %s1060
      %p1057 = scmp.ge.s32.totalorder %s1056, 30
      %v1061 = vphi 0.0, %v1097
      %v1062 = vphi %v1054, %v1098
    $region28: #{tpu_custom_call.1} parent=1 // loop_header_branch
      %1059 = sbr.rel (%p1057) target = $region32
    $region29: #{tpu_custom_call.1} parent=1 // loop_body
      %v1063 = vadd.f32 %v1061, %v1062
      %v1064 = vmul.f32 %v1063, 0.5
      %v1066 = vrot.slane %v1064, 1
      %vm1069 = vcmp.gt.f32.partialorder %v972, %v1064
      %vm1070 = vcmp.gt.f32.partialorder %v973, %v1064
      %vm1071 = vcmp.gt.f32.partialorder %v974, %v1066
      %vm1072 = vcmp.gt.f32.partialorder %v975, %v1066
      %v1073 = vsel %vm1069, 1, 0
      %v1074 = vsel %vm1070, 1, 0
      %v1075 = vsel %vm1071, 1, 0
      %v1076 = vsel %vm1072, 1, 0
      %v1077 = vcvt.s32.f32 %v1073
      %v1078 = vcvt.s32.f32 %v1074
      %v1079 = vcvt.s32.f32 %v1075
      %v1080 = vcvt.s32.f32 %v1076
      %v1085 = vrot.slane %v1079, 7
      %v1086 = vsel %vm980, %v1085, %v1077
      %v1087 = vrot.slane %v1080, 7
      %v1088 = vsel %vm980, %v1087, %v1078
      %v1091 = vsel %vm985, %v1086, 0.0
      %v1092 = vsel %vm985, %v1088, 0.0
      %v1093 = vadd.f32 %v1091, %v1092
      %1094 = vadd.xlane.f32.xlu0 %v1093
      %v1095 = vpop.xlane.xlu0 %1094
      %vm1096 = vcmp.ge.f32.partialorder %v1095, %v1041
      %v1097 = vsel %vm1096, %v1064, %v1061
      %v1098 = vsel %vm1096, %v1062, %v1064
    $region30: #{tpu_custom_call.1} parent=1 // loop_footer
      %s1060 = sadd.s32 1, %s1056
    $region31: #{tpu_custom_call.1} parent=1 // loop_footer_branch
      %1055 = sbr.rel target = $region27
    $region32: #{tpu_custom_call.1} parent=1 // loop_exit
      _
    %v1100 = vrot.slane %v1062, 1
    %vm1103 = vcmp.gt.f32.partialorder %v972, %v1062
    %vm1104 = vcmp.gt.f32.partialorder %v973, %v1062
    %vm1105 = vcmp.gt.f32.partialorder %v974, %v1100
    %vm1106 = vcmp.gt.f32.partialorder %v975, %v1100
    %v1107 = vsel %vm1103, 1, 0
    %v1108 = vsel %vm1104, 1, 0
    %v1109 = vsel %vm1105, 1, 0
    %v1110 = vsel %vm1106, 1, 0
    %v1111 = vcvt.s32.f32 %v1107
    %v1112 = vcvt.s32.f32 %v1108
    %v1113 = vcvt.s32.f32 %v1109
    %v1114 = vcvt.s32.f32 %v1110
    %v1119 = vrot.slane %v1113, 7
    %v1120 = vsel %vm980, %v1119, %v1111
    %v1121 = vrot.slane %v1114, 7
    %v1122 = vsel %vm980, %v1121, %v1112
    %v1125 = vsel %vm985, %v1120, 0.0
    %v1126 = vsel %vm985, %v1122, 0.0
    %v1127 = vadd.f32 %v1125, %v1126
    %1128 = vadd.xlane.f32.xlu0 %v1127
    %v1129 = vpop.xlane.xlu0 %1128
    %v1130 = vmul.f32 %v972, %v1111
    %v1131 = vmul.f32 %v973, %v1112
    %v1132 = vmul.f32 %v974, %v1113
    %v1133 = vmul.f32 %v975, %v1114
    %v1138 = vrot.slane %v1132, 7
    %v1139 = vsel %vm980, %v1138, %v1130
    %v1140 = vrot.slane %v1133, 7
    %v1141 = vsel %vm980, %v1140, %v1131
    %v1144 = vsel %vm985, %v1139, 0.0
    %v1145 = vsel %vm985, %v1141, 0.0
    %v1146 = vadd.f32 %v1144, %v1145
    %1147 = vadd.xlane.f32.xlu0 %v1146
    %v1148 = vpop.xlane.xlu0 %1147
    %v1149 = vsub.f32 %v1041, %v1129
    %v1150 = vmax.f32 %v1149, 0.0
    %v1151 = vmul.f32 %v1150, %v1062
    %v1152 = vadd.f32 %v1148, %v1151
    %vm1153 = vcmp.eq.s32.totalorder %v241, 0
    %v1154 = vsel %vm1153, %v990, 0.0
    %vm1155 = vcmp.eq.s32.totalorder %v241, 1
    %v1156 = vsel %vm1155, %v1007, 0.0
    %v1157 = vadd.f32 %v1154, %v1156
    %vm1158 = vcmp.eq.s32.totalorder %v241, 2
    %v1159 = vsel %vm1158, %v1040, 0.0
    %v1160 = vadd.f32 %v1157, %v1159
    %vm1161 = vcmp.eq.s32.totalorder %v241, 3
    %v1162 = vsel %vm1161, %v1152, 0.0
    %v1163 = vadd.f32 %v1160, %v1162
    %1164 = vst [vmem:[#allocation7] sm:$0x3] %v1163
    // Predicated region
    $region33: #{tpu_custom_call.1} parent=1 // pred_check
      _
    $region34: #{tpu_custom_call.1} parent=1 // pred_check_branch
      %1166 = sbr.rel (0) target = $region36
    $region35: #{tpu_custom_call.1} parent=1 // pred_region
      %s1168 = ssub.s32 32, 32
      %1169 = vsyncadd [#allocation4], %s1168
      %s1171 = sshll.u32 [#allocation7], 4
      %s1172 = int_to_ptr.vmem [resolvable:$true] %s1171
      %1174 = dma.vmem_to_hbm [thread:$0]  %s1172, 32, %s4, [#allocation4]
    $region36: #{tpu_custom_call.1} parent=1 // pred_fallthru
      _
    // Predicated region
    $region37: #{tpu_custom_call.1} parent=1 // pred_check
      _
    $region38: #{tpu_custom_call.1} parent=1 // pred_check_branch
      %1176 = sbr.rel (0) target = $region40
    $region39: #{tpu_custom_call.1} parent=1 // pred_region
      %1177 = dma.done [#allocation4], 32
    $region40: #{tpu_custom_call.1} parent=1 // pred_fallthru
      _
    %1178 = vsyncpa [#allocation3], 1
    %1179 = vsyncpa [#allocation6], 1
    %1180 = vsyncpa [#allocation4], 1

</llo_original>
